<compile_context>
chip_gen: v7x
topology: tpu7x:2x2x1
jax: 0.10.0
libtpu: 0.0.40
codegen_flags: <defaults>
</compile_context>

<pallas_src>
import jax
import jax.numpy as jnp
from jax.experimental import pallas as pl
from jax.experimental.pallas import tpu as pltpu

# ----------------------------- config (small) --------------------------------
VOCAB = 64
D_MODEL = 32
N_HEADS = 4
D_KV = 8                      # per-head dim; N_HEADS * D_KV == D_MODEL
D_FF = 64
N_LAYERS = 2
SEQ = 8
BATCH = 2
NUM_BUCKETS = 8
MAX_DISTANCE = 16
EPS = 1e-6
NEG_INF = -1e9                # large-but-safe mask value (not finfo.min)
OUT_LANES = 128               # lane-dense output padding (unmasked stores)


# ------------------------------ shared math -----------------------------------
def _rms_norm(x, w):
    # T5 LayerNorm: no mean subtraction, no bias.
    var = jnp.mean(x * x, axis=-1, keepdims=True)
    return x * jax.lax.rsqrt(var + EPS) * w


# ------------------------------ Pallas kernel ---------------------------------
def t5_encoder_kernel(x_ref, bias_ref, rep_ref, segm_ref, bdones_ref, padp_ref,
                      ln1_ref, wq_ref, wk_ref, wv_ref, wo_ref,
                      ln2_ref, wi_ref, wff_ref, lnf_ref,
                      out_ref):
    """Shape-polymorphic body: operates on [nb*S, ...] slabs (nb = BATCH for the
    collapsed no-grid path, nb = 1 per grid step on the v7x batch-parallel path)."""
    x = x_ref[...]              # [nb*S, D]
    bias = bias_ref[...]        # [nb*S, nb*H*S]  packed pos-bias + key mask (+ -1e9 cross-batch)
    rep = rep_ref[...]          # [nb*H*S, nb*S]  0/1 row-replication matrix
    segm = segm_ref[...]        # [nb*H*S, D]     per-row head-column mask
    bdones = bdones_ref[...]    # [nb*H*S, nb*H*S] block-diag ones per (batch, head) key block

    for l in range(N_LAYERS):
        # ---- self-attention block ----
        ln1 = _rms_norm(x, ln1_ref[l])                                        # [nb*S, D]
        q = jnp.dot(ln1, wq_ref[l], preferred_element_type=jnp.float32)       # [nb*S, D]
        # Expand ln1 to one row per (batch, head, key) on the MXU, project, and
        # keep only that head's feature columns -> block-structured K / V tiles.
        ln1_rep = jnp.dot(rep, ln1, preferred_element_type=jnp.float32)       # [nb*H*S, D]
        kt = jnp.dot(ln1_rep, wk_ref[l], preferred_element_type=jnp.float32) * segm
        vt = jnp.dot(ln1_rep, wv_ref[l], preferred_element_type=jnp.float32) * segm
        # All (batch, head) scores in one push; T5 uses NO 1/sqrt(d_kv) scaling.
        s = jax.lax.dot_general(q, kt, (((1,), (1,)), ((), ())),
                                preferred_element_type=jnp.float32) + bias    # [nb*S, nb*H*S]
        # Row-global shift: softmax is shift-invariant within each head segment,
        # and masked / cross-batch logits (-1e9) underflow cleanly to exp()=0.
        s = s - jnp.max(s, axis=-1, keepdims=True)
        p = jnp.exp(s)
        # Per-head denominators, broadcast to every key lane of that head.
        denom = jnp.dot(p, bdones, preferred_element_type=jnp.float32)
        # maximum() guards all-zero cross-batch blocks (0 * huge = 0, never NaN).
        p = p * pl.reciprocal(jnp.maximum(denom, 1e-30), approx=True)
        ctx = jnp.dot(p, vt, preferred_element_type=jnp.float32)              # [nb*S, D] merged heads
        x = x + jnp.dot(ctx, wo_ref[l], preferred_element_type=jnp.float32)

        # ---- feed-forward block (T5 DenseReluDense) ----
        ln2 = _rms_norm(x, ln2_ref[l])
        h_ff = jnp.maximum(
            jnp.dot(ln2, wi_ref[l], preferred_element_type=jnp.float32), 0.0)
        x = x + jnp.dot(h_ff, wff_ref[l], preferred_element_type=jnp.float32)

    # ---- final RMSNorm + lane-dense store (identity-pad matmul, no concat) ----
    y = _rms_norm(x, lnf_ref[...])                                            # [nb*S, D]
    out_ref[...] = jnp.dot(y, padp_ref[...], preferred_element_type=jnp.float32)


# ------------------------- host-side constant builders ------------------------
def build_attn_constants(nb):
    """rep / seg_mask / bd_ones / pad_proj for an nb-batch slab."""
    r_b = jnp.repeat(jnp.arange(nb), N_HEADS * SEQ)            # [nb*H*S]
    r_h = jnp.tile(jnp.repeat(jnp.arange(N_HEADS), SEQ), nb)   # [nb*H*S]
    r_k = jnp.tile(jnp.arange(SEQ), nb * N_HEADS)              # [nb*H*S]
    c_b = jnp.repeat(jnp.arange(nb), SEQ)                      # [nb*S]
    c_k = jnp.tile(jnp.arange(SEQ), nb)                        # [nb*S]
    rep = ((r_b[:, None] == c_b[None, :]) &
           (r_k[:, None] == c_k[None, :])).astype(jnp.float32)         # [nb*H*S, nb*S]
    col_h = jnp.arange(D_MODEL) // D_KV
    seg_mask = (r_h[:, None] == col_h[None, :]).astype(jnp.float32)    # [nb*H*S, D]
    bd_ones = ((r_b[:, None] == r_b[None, :]) &
               (r_h[:, None] == r_h[None, :])).astype(jnp.float32)     # [nb*H*S, nb*H*S]
    pad_proj = jnp.eye(D_MODEL, OUT_LANES, dtype=jnp.float32)          # [D, 128]
    return rep, seg_mask, bd_ones, pad_proj


def relative_position_bucket(relative_position, num_buckets, max_distance):
    # Bidirectional bucketing, as in HF T5.
    num_buckets //= 2
    rb = (relative_position > 0).astype(jnp.int32) * num_buckets
    rp = jnp.abs(relative_position)
    max_exact = num_buckets // 2
    is_small = rp < max_exact
    rp_safe = jnp.maximum(rp, 1).astype(jnp.float32)
    rp_if_large = max_exact + (
        jnp.log(rp_safe / max_exact)
        / jnp.log(max_distance / max_exact)
        * (num_buckets - max_exact)
    ).astype(jnp.int32)
    rp_if_large = jnp.minimum(rp_if_large, num_buckets - 1)
    return rb + jnp.where(is_small, rp, rp_if_large)


def make_position_bias(rel_bias_table):
    ctx = jnp.arange(SEQ)[:, None]
    mem = jnp.arange(SEQ)[None, :]
    buckets = relative_position_bucket(mem - ctx, NUM_BUCKETS, MAX_DISTANCE)  # [S,S]
    bias = jnp.take(rel_bias_table, buckets, axis=0)                          # [S,S,H]
    return jnp.transpose(bias, (2, 0, 1))                                     # [H,S,S]


def build_bias_blocks(attention_mask, rel_bias_table):
    """Per-batch packed bias blocks: [B, S, H*S] with column index h*S + k."""
    pos_bias = make_position_bias(rel_bias_table)                        # [H, S, S]
    ext = (1.0 - attention_mask.astype(jnp.float32)) * NEG_INF           # [B, S] (key mask)
    pb = jnp.transpose(pos_bias, (1, 0, 2))                              # [S, H, S]
    blocks = pb[None, :, :, :] + ext[:, None, None, :]                   # [B, S, H, S]
    return blocks.reshape(BATCH, SEQ, N_HEADS * SEQ)                     # [B, S, H*S]


# ------------------------------ pallas_call wrapper ----------------------------
def _use_batch_parallel_grid():
    # v7x has 2 TensorCores per chip: split the batch across them.
    # v5e / v6e (single TC) keep the collapsed no-grid variant.
    try:
        kind = jax.devices()[0].device_kind.lower()
    except Exception:
        return False
    return "v7" in kind


def run_encoder(x_flat, attention_mask, params):
    """x_flat: [B*S, D] f32 -> hidden states [B, S, D]."""
    bias_blocks = build_bias_blocks(attention_mask, params["rel_bias"])   # [B, S, H*S]
    lnf2d = params["lnf"].reshape(1, D_MODEL)
    HS = N_HEADS * SEQ

    if _use_batch_parallel_grid():
        # ---- v7x: grid=(BATCH,), one batch element per TensorCore ----
        rep, seg_mask, bd_ones, pad_proj = build_attn_constants(1)
        bias = bias_blocks.reshape(BATCH * SEQ, HS)
        row_blk = lambda i: (i, 0)
        cst2 = lambda i: (0, 0)
        cst3 = lambda i: (0, 0, 0)
        arrays_and_specs = [
            (x_flat,        pl.BlockSpec((SEQ, D_MODEL), row_blk)),
            (bias,          pl.BlockSpec((SEQ, HS), row_blk)),
            (rep,           pl.BlockSpec((HS, SEQ), cst2)),
            (seg_mask,      pl.BlockSpec((HS, D_MODEL), cst2)),
            (bd_ones,       pl.BlockSpec((HS, HS), cst2)),
            (pad_proj,      pl.BlockSpec((D_MODEL, OUT_LANES), cst2)),
            (params["ln1"], pl.BlockSpec((N_LAYERS, D_MODEL), cst2)),
            (params["wq"],  pl.BlockSpec((N_LAYERS, D_MODEL, D_MODEL), cst3)),
            (params["wk"],  pl.BlockSpec((N_LAYERS, D_MODEL, D_MODEL), cst3)),
            (params["wv"],  pl.BlockSpec((N_LAYERS, D_MODEL, D_MODEL), cst3)),
            (params["wo"],  pl.BlockSpec((N_LAYERS, D_MODEL, D_MODEL), cst3)),
            (params["ln2"], pl.BlockSpec((N_LAYERS, D_MODEL), cst2)),
            (params["wi"],  pl.BlockSpec((N_LAYERS, D_MODEL, D_FF), cst3)),
            (params["wff"], pl.BlockSpec((N_LAYERS, D_FF, D_MODEL), cst3)),
            (lnf2d,         pl.BlockSpec((1, D_MODEL), cst2)),
        ]
        out = pl.pallas_call(
            t5_encoder_kernel,
            out_shape=jax.ShapeDtypeStruct((BATCH * SEQ, OUT_LANES), jnp.float32),
            grid=(BATCH,),
            in_specs=[s for _, s in arrays_and_specs],
            out_specs=pl.BlockSpec((SEQ, OUT_LANES), row_blk),
            compiler_params=pltpu.CompilerParams(dimension_semantics=("parallel",)),
        )(*[a for a, _ in arrays_and_specs])
    else:
        # ---- v5e / v6e: single slab, no grid, no pipeline overhead ----
        rep, seg_mask, bd_ones, pad_proj = build_attn_constants(BATCH)
        # Packed bias with cross-batch score blocks hard-masked to NEG_INF.
        bias = jnp.full((BATCH * SEQ, BATCH * HS), NEG_INF, jnp.float32)
        for b in range(BATCH):
            bias = bias.at[b * SEQ:(b + 1) * SEQ,
                           b * HS:(b + 1) * HS].set(bias_blocks[b])
        arrays = [x_flat, bias, rep, seg_mask, bd_ones, pad_proj,
                  params["ln1"], params["wq"], params["wk"], params["wv"], params["wo"],
                  params["ln2"], params["wi"], params["wff"], lnf2d]
        vmem = pl.BlockSpec(memory_space=pltpu.MemorySpace.VMEM)
        out = pl.pallas_call(
            t5_encoder_kernel,
            out_shape=jax.ShapeDtypeStruct((BATCH * SEQ, OUT_LANES), jnp.float32),
            in_specs=[vmem] * len(arrays),
            out_specs=vmem,
        )(*arrays)

    # Slice off the lane padding and restore [B, S, D].
    return out[:, :D_MODEL].reshape(BATCH, SEQ, D_MODEL)


# ------------------------------- model glue ------------------------------------
def init_params(key):
    def nrm(k, shape, scale=0.05):
        return scale * jax.random.normal(k, shape, dtype=jnp.float32)
    ks = jax.random.split(key, 10)
    return {
        "emb": nrm(ks[0], (VOCAB, D_MODEL)),
        "rel_bias": nrm(ks[1], (NUM_BUCKETS, N_HEADS)),
        "ln1": jnp.ones((N_LAYERS, D_MODEL), jnp.float32),
        "wq": nrm(ks[2], (N_LAYERS, D_MODEL, D_MODEL)),
        "wk": nrm(ks[3], (N_LAYERS, D_MODEL, D_MODEL)),
        "wv": nrm(ks[4], (N_LAYERS, D_MODEL, D_MODEL)),
        "wo": nrm(ks[5], (N_LAYERS, D_MODEL, D_MODEL)),
        "ln2": jnp.ones((N_LAYERS, D_MODEL), jnp.float32),
        "wi": nrm(ks[6], (N_LAYERS, D_MODEL, D_FF)),
        "wff": nrm(ks[7], (N_LAYERS, D_FF, D_MODEL)),
        "lnf": jnp.ones((D_MODEL,), jnp.float32),
    }


def t5_encoder_forward(input_ids, attention_mask, params):
    """Equivalent of T5Encoder.forward: returns last_hidden_state[:, 0, :]."""
    x_emb = jnp.take(params["emb"], input_ids, axis=0)                   # [B, S, D]
    hidden = run_encoder(x_emb.reshape(BATCH * SEQ, D_MODEL),
                         attention_mask, params)                         # [B, S, D]
    return hidden[:, 0, :]                                               # [B, D]


# ----------------------------- pure-JAX reference -------------------------------
def reference_forward(input_ids, attention_mask, params):
    x = jnp.take(params["emb"], input_ids, axis=0)
    pos_bias = make_position_bias(params["rel_bias"])
    ext = (1.0 - attention_mask.astype(jnp.float32))[:, None, None, :] * NEG_INF
    bias = pos_bias[None] + ext
    for l in range(N_LAYERS):
        ln1 = _rms_norm(x, params["ln1"][l])
        q = ln1 @ params["wq"][l]
        k = ln1 @ params["wk"][l]
        v = ln1 @ params["wv"][l]
        rs = lambda t: jnp.transpose(
            t.reshape(BATCH, SEQ, N_HEADS, D_KV), (0, 2, 1, 3))
        qh, kh, vh = rs(q), rs(k), rs(v)
        scores = jnp.einsum("bhqd,bhkd->bhqk", qh, kh) + bias
        p = jax.nn.softmax(scores, axis=-1)
        ctx = jnp.einsum("bhqk,bhkd->bhqd", p, vh)
        ctx = jnp.transpose(ctx, (0, 2, 1, 3)).reshape(BATCH, SEQ, D_MODEL)
        x = x + ctx @ params["wo"][l]
        ln2 = _rms_norm(x, params["ln2"][l])
        x = x + jnp.maximum(ln2 @ params["wi"][l], 0.0) @ params["wff"][l]
    x = _rms_norm(x, params["lnf"])
    return x[:, 0, :]


# ------------------------------------ main --------------------------------------
if __name__ == "__main__":
    key = jax.random.PRNGKey(0)
    k_param, k_ids = jax.random.split(key)
    params = init_params(k_param)

    input_ids = jax.random.randint(k_ids, (BATCH, SEQ), 0, VOCAB, dtype=jnp.int32)
    attention_mask = jnp.array(
        [[1, 1, 1, 1, 1, 1, 1, 1],
         [1, 1, 1, 1, 1, 0, 0, 0]], dtype=jnp.int32)

    out = jax.block_until_ready(t5_encoder_forward(input_ids, attention_mask, params))
    assert out.shape == (BATCH, D_MODEL)
    assert bool(jnp.all(jnp.isfinite(out)))

    ref = jax.block_until_ready(reference_forward(input_ids, attention_mask, params))
    max_diff = float(jnp.max(jnp.abs(out - ref)))
    if max_diff > 1e-2:
        raise AssertionError(f"kernel/reference mismatch: max|diff|={max_diff}")

    print("KERNEL_OK")
</pallas_src>

<mosaic_0001>
module attributes {stable_mosaic.version = 11 : i64} {
  func.func @t5_encoder_kernel(%arg0: memref<16x32xf32, #tpu.memory_space<vmem>>, %arg1: memref<16x64xf32, #tpu.memory_space<vmem>>, %arg2: memref<64x16xf32, #tpu.memory_space<vmem>>, %arg3: memref<64x32xf32, #tpu.memory_space<vmem>>, %arg4: memref<64x64xf32, #tpu.memory_space<vmem>>, %arg5: memref<32x128xf32, #tpu.memory_space<vmem>>, %arg6: memref<2x32xf32, #tpu.memory_space<vmem>>, %arg7: memref<2x32x32xf32, #tpu.memory_space<vmem>>, %arg8: memref<2x32x32xf32, #tpu.memory_space<vmem>>, %arg9: memref<2x32x32xf32, #tpu.memory_space<vmem>>, %arg10: memref<2x32x32xf32, #tpu.memory_space<vmem>>, %arg11: memref<2x32xf32, #tpu.memory_space<vmem>>, %arg12: memref<2x32x64xf32, #tpu.memory_space<vmem>>, %arg13: memref<2x64x32xf32, #tpu.memory_space<vmem>>, %arg14: memref<1x32xf32, #tpu.memory_space<vmem>>, %arg15: memref<16x128xf32, #tpu.memory_space<vmem>>) attributes {dimension_semantics = [], scalar_prefetch = 0 : i64, scratch_operands = 0 : i64, tpu.core_type = #tpu.core_type<tc>} {
    %c0 = arith.constant 0 : index
    %c0_0 = arith.constant 0 : index
    %0 = vector.load %arg0[%c0, %c0_0] : memref<16x32xf32, #tpu.memory_space<vmem>>, vector<16x32xf32>
    %c0_1 = arith.constant 0 : index
    %c0_2 = arith.constant 0 : index
    %1 = vector.load %arg1[%c0_1, %c0_2] : memref<16x64xf32, #tpu.memory_space<vmem>>, vector<16x64xf32>
    %c0_3 = arith.constant 0 : index
    %c0_4 = arith.constant 0 : index
    %2 = vector.load %arg2[%c0_3, %c0_4] : memref<64x16xf32, #tpu.memory_space<vmem>>, vector<64x16xf32>
    %c0_5 = arith.constant 0 : index
    %c0_6 = arith.constant 0 : index
    %3 = vector.load %arg3[%c0_5, %c0_6] : memref<64x32xf32, #tpu.memory_space<vmem>>, vector<64x32xf32>
    %c0_7 = arith.constant 0 : index
    %c0_8 = arith.constant 0 : index
    %4 = vector.load %arg4[%c0_7, %c0_8] : memref<64x64xf32, #tpu.memory_space<vmem>>, vector<64x64xf32>
    %c0_9 = arith.constant 0 : index
    %c0_10 = arith.constant 0 : index
    %5 = vector.load %arg6[%c0_9, %c0_10] : memref<2x32xf32, #tpu.memory_space<vmem>>, vector<1x32xf32>
    %6 = vector.shape_cast %5 : vector<1x32xf32> to vector<32xf32>
    %7 = arith.mulf %0, %0 : vector<16x32xf32>
    %cst = arith.constant dense<0.000000e+00> : vector<16xf32>
    %8 = vector.multi_reduction <add>, %7, %cst [1] : vector<16x32xf32> to vector<16xf32>
    %9 = vector.shape_cast %8 : vector<16xf32> to vector<16x1xf32>
    %cst_11 = arith.constant 3.200000e+01 : f32
    %10 = vector.broadcast %cst_11 : f32 to vector<16x1xf32>
    %11 = arith.divf %9, %10 : vector<16x1xf32>
    %cst_12 = arith.constant 9.99999997E-7 : f32
    %12 = vector.broadcast %cst_12 : f32 to vector<16x1xf32>
    %13 = arith.addf %11, %12 : vector<16x1xf32>
    %14 = math.rsqrt %13 : vector<16x1xf32>
    %15 = vector.broadcast %14 : vector<16x1xf32> to vector<16x32xf32>
    %16 = arith.mulf %0, %15 : vector<16x32xf32>
    %17 = vector.shape_cast %6 : vector<32xf32> to vector<1x32xf32>
    %18 = vector.broadcast %17 : vector<1x32xf32> to vector<16x32xf32>
    %19 = arith.mulf %16, %18 : vector<16x32xf32>
    %c0_13 = arith.constant 0 : index
    %c0_14 = arith.constant 0 : index
    %c0_15 = arith.constant 0 : index
    %20 = vector.load %arg7[%c0_13, %c0_14, %c0_15] : memref<2x32x32xf32, #tpu.memory_space<vmem>>, vector<1x32x32xf32>
    %21 = vector.shape_cast %20 : vector<1x32x32xf32> to vector<32x32xf32>
    %cst_16 = arith.constant dense<0.000000e+00> : vector<16x32xf32>
    %22 = tpu.matmul %19, %21, %cst_16 {dimension_numbers = #tpu.dot_dimension_numbers<[1], [0], [0], [1], [0, 0, 1, 1], [], []>} : vector<16x32xf32>, vector<32x32xf32>, vector<16x32xf32> -> vector<16x32xf32>
    %cst_17 = arith.constant dense<0.000000e+00> : vector<64x32xf32>
    %23 = tpu.matmul %2, %19, %cst_17 {dimension_numbers = #tpu.dot_dimension_numbers<[1], [0], [0], [1], [0, 0, 1, 1], [], []>} : vector<64x16xf32>, vector<16x32xf32>, vector<64x32xf32> -> vector<64x32xf32>
    %c0_18 = arith.constant 0 : index
    %c0_19 = arith.constant 0 : index
    %c0_20 = arith.constant 0 : index
    %24 = vector.load %arg8[%c0_18, %c0_19, %c0_20] : memref<2x32x32xf32, #tpu.memory_space<vmem>>, vector<1x32x32xf32>
    %25 = vector.shape_cast %24 : vector<1x32x32xf32> to vector<32x32xf32>
    %cst_21 = arith.constant dense<0.000000e+00> : vector<64x32xf32>
    %26 = tpu.matmul %23, %25, %cst_21 {dimension_numbers = #tpu.dot_dimension_numbers<[1], [0], [0], [1], [0, 0, 1, 1], [], []>} : vector<64x32xf32>, vector<32x32xf32>, vector<64x32xf32> -> vector<64x32xf32>
    %27 = arith.mulf %26, %3 : vector<64x32xf32>
    %c0_22 = arith.constant 0 : index
    %c0_23 = arith.constant 0 : index
    %c0_24 = arith.constant 0 : index
    %28 = vector.load %arg9[%c0_22, %c0_23, %c0_24] : memref<2x32x32xf32, #tpu.memory_space<vmem>>, vector<1x32x32xf32>
    %29 = vector.shape_cast %28 : vector<1x32x32xf32> to vector<32x32xf32>
    %cst_25 = arith.constant dense<0.000000e+00> : vector<64x32xf32>
    %30 = tpu.matmul %23, %29, %cst_25 {dimension_numbers = #tpu.dot_dimension_numbers<[1], [0], [0], [1], [0, 0, 1, 1], [], []>} : vector<64x32xf32>, vector<32x32xf32>, vector<64x32xf32> -> vector<64x32xf32>
    %31 = arith.mulf %30, %3 : vector<64x32xf32>
    %cst_26 = arith.constant dense<0.000000e+00> : vector<16x64xf32>
    %32 = tpu.matmul %22, %27, %cst_26 {dimension_numbers = #tpu.dot_dimension_numbers<[1], [1], [0], [0], [0, 0, 1, 0], [], []>} : vector<16x32xf32>, vector<64x32xf32>, vector<16x64xf32> -> vector<16x64xf32>
    %33 = arith.addf %32, %1 : vector<16x64xf32>
    %cst_27 = arith.constant dense<0xFF800000> : vector<16xf32>
    %34 = vector.multi_reduction <maximumf>, %33, %cst_27 [1] : vector<16x64xf32> to vector<16xf32>
    %35 = vector.shape_cast %34 : vector<16xf32> to vector<16x1xf32>
    %36 = vector.broadcast %35 : vector<16x1xf32> to vector<16x64xf32>
    %37 = arith.subf %33, %36 : vector<16x64xf32>
    %38 = math.exp %37 : vector<16x64xf32>
    %cst_28 = arith.constant dense<0.000000e+00> : vector<16x64xf32>
    %39 = tpu.matmul %38, %4, %cst_28 {dimension_numbers = #tpu.dot_dimension_numbers<[1], [0], [0], [1], [0, 0, 1, 1], [], []>} : vector<16x64xf32>, vector<64x64xf32>, vector<16x64xf32> -> vector<16x64xf32>
    %cst_29 = arith.constant 1.000000e-30 : f32
    %40 = vector.broadcast %cst_29 : f32 to vector<16x64xf32>
    %41 = arith.maximumf %39, %40 : vector<16x64xf32>
    %42 = tpu.reciprocal %41 {approx = true} : vector<16x64xf32> -> vector<16x64xf32>
    %43 = arith.mulf %38, %42 : vector<16x64xf32>
    %cst_30 = arith.constant dense<0.000000e+00> : vector<16x32xf32>
    %44 = tpu.matmul %43, %31, %cst_30 {dimension_numbers = #tpu.dot_dimension_numbers<[1], [0], [0], [1], [0, 0, 1, 1], [], []>} : vector<16x64xf32>, vector<64x32xf32>, vector<16x32xf32> -> vector<16x32xf32>
    %c0_31 = arith.constant 0 : index
    %c0_32 = arith.constant 0 : index
    %c0_33 = arith.constant 0 : index
    %45 = vector.load %arg10[%c0_31, %c0_32, %c0_33] : memref<2x32x32xf32, #tpu.memory_space<vmem>>, vector<1x32x32xf32>
    %46 = vector.shape_cast %45 : vector<1x32x32xf32> to vector<32x32xf32>
    %cst_34 = arith.constant dense<0.000000e+00> : vector<16x32xf32>
    %47 = tpu.matmul %44, %46, %cst_34 {dimension_numbers = #tpu.dot_dimension_numbers<[1], [0], [0], [1], [0, 0, 1, 1], [], []>} : vector<16x32xf32>, vector<32x32xf32>, vector<16x32xf32> -> vector<16x32xf32>
    %48 = arith.addf %0, %47 : vector<16x32xf32>
    %c0_35 = arith.constant 0 : index
    %c0_36 = arith.constant 0 : index
    %49 = vector.load %arg11[%c0_35, %c0_36] : memref<2x32xf32, #tpu.memory_space<vmem>>, vector<1x32xf32>
    %50 = vector.shape_cast %49 : vector<1x32xf32> to vector<32xf32>
    %51 = arith.mulf %48, %48 : vector<16x32xf32>
    %cst_37 = arith.constant dense<0.000000e+00> : vector<16xf32>
    %52 = vector.multi_reduction <add>, %51, %cst_37 [1] : vector<16x32xf32> to vector<16xf32>
    %53 = vector.shape_cast %52 : vector<16xf32> to vector<16x1xf32>
    %cst_38 = arith.constant 3.200000e+01 : f32
    %54 = vector.broadcast %cst_38 : f32 to vector<16x1xf32>
    %55 = arith.divf %53, %54 : vector<16x1xf32>
    %cst_39 = arith.constant 9.99999997E-7 : f32
    %56 = vector.broadcast %cst_39 : f32 to vector<16x1xf32>
    %57 = arith.addf %55, %56 : vector<16x1xf32>
    %58 = math.rsqrt %57 : vector<16x1xf32>
    %59 = vector.broadcast %58 : vector<16x1xf32> to vector<16x32xf32>
    %60 = arith.mulf %48, %59 : vector<16x32xf32>
    %61 = vector.shape_cast %50 : vector<32xf32> to vector<1x32xf32>
    %62 = vector.broadcast %61 : vector<1x32xf32> to vector<16x32xf32>
    %63 = arith.mulf %60, %62 : vector<16x32xf32>
    %c0_40 = arith.constant 0 : index
    %c0_41 = arith.constant 0 : index
    %c0_42 = arith.constant 0 : index
    %64 = vector.load %arg12[%c0_40, %c0_41, %c0_42] : memref<2x32x64xf32, #tpu.memory_space<vmem>>, vector<1x32x64xf32>
    %65 = vector.shape_cast %64 : vector<1x32x64xf32> to vector<32x64xf32>
    %cst_43 = arith.constant dense<0.000000e+00> : vector<16x64xf32>
    %66 = tpu.matmul %63, %65, %cst_43 {dimension_numbers = #tpu.dot_dimension_numbers<[1], [0], [0], [1], [0, 0, 1, 1], [], []>} : vector<16x32xf32>, vector<32x64xf32>, vector<16x64xf32> -> vector<16x64xf32>
    %cst_44 = arith.constant 0.000000e+00 : f32
    %67 = vector.broadcast %cst_44 : f32 to vector<16x64xf32>
    %68 = arith.maximumf %66, %67 : vector<16x64xf32>
    %c0_45 = arith.constant 0 : index
    %c0_46 = arith.constant 0 : index
    %c0_47 = arith.constant 0 : index
    %69 = vector.load %arg13[%c0_45, %c0_46, %c0_47] : memref<2x64x32xf32, #tpu.memory_space<vmem>>, vector<1x64x32xf32>
    %70 = vector.shape_cast %69 : vector<1x64x32xf32> to vector<64x32xf32>
    %cst_48 = arith.constant dense<0.000000e+00> : vector<16x32xf32>
    %71 = tpu.matmul %68, %70, %cst_48 {dimension_numbers = #tpu.dot_dimension_numbers<[1], [0], [0], [1], [0, 0, 1, 1], [], []>} : vector<16x64xf32>, vector<64x32xf32>, vector<16x32xf32> -> vector<16x32xf32>
    %72 = arith.addf %48, %71 : vector<16x32xf32>
    %c1 = arith.constant 1 : index
    %c0_49 = arith.constant 0 : index
    %73 = vector.load %arg6[%c1, %c0_49] : memref<2x32xf32, #tpu.memory_space<vmem>>, vector<1x32xf32>
    %74 = vector.shape_cast %73 : vector<1x32xf32> to vector<32xf32>
    %75 = arith.mulf %72, %72 : vector<16x32xf32>
    %cst_50 = arith.constant dense<0.000000e+00> : vector<16xf32>
    %76 = vector.multi_reduction <add>, %75, %cst_50 [1] : vector<16x32xf32> to vector<16xf32>
    %77 = vector.shape_cast %76 : vector<16xf32> to vector<16x1xf32>
    %cst_51 = arith.constant 3.200000e+01 : f32
    %78 = vector.broadcast %cst_51 : f32 to vector<16x1xf32>
    %79 = arith.divf %77, %78 : vector<16x1xf32>
    %cst_52 = arith.constant 9.99999997E-7 : f32
    %80 = vector.broadcast %cst_52 : f32 to vector<16x1xf32>
    %81 = arith.addf %79, %80 : vector<16x1xf32>
    %82 = math.rsqrt %81 : vector<16x1xf32>
    %83 = vector.broadcast %82 : vector<16x1xf32> to vector<16x32xf32>
    %84 = arith.mulf %72, %83 : vector<16x32xf32>
    %85 = vector.shape_cast %74 : vector<32xf32> to vector<1x32xf32>
    %86 = vector.broadcast %85 : vector<1x32xf32> to vector<16x32xf32>
    %87 = arith.mulf %84, %86 : vector<16x32xf32>
    %c1_53 = arith.constant 1 : index
    %c0_54 = arith.constant 0 : index
    %c0_55 = arith.constant 0 : index
    %88 = vector.load %arg7[%c1_53, %c0_54, %c0_55] : memref<2x32x32xf32, #tpu.memory_space<vmem>>, vector<1x32x32xf32>
    %89 = vector.shape_cast %88 : vector<1x32x32xf32> to vector<32x32xf32>
    %cst_56 = arith.constant dense<0.000000e+00> : vector<16x32xf32>
    %90 = tpu.matmul %87, %89, %cst_56 {dimension_numbers = #tpu.dot_dimension_numbers<[1], [0], [0], [1], [0, 0, 1, 1], [], []>} : vector<16x32xf32>, vector<32x32xf32>, vector<16x32xf32> -> vector<16x32xf32>
    %cst_57 = arith.constant dense<0.000000e+00> : vector<64x32xf32>
    %91 = tpu.matmul %2, %87, %cst_57 {dimension_numbers = #tpu.dot_dimension_numbers<[1], [0], [0], [1], [0, 0, 1, 1], [], []>} : vector<64x16xf32>, vector<16x32xf32>, vector<64x32xf32> -> vector<64x32xf32>
    %c1_58 = arith.constant 1 : index
    %c0_59 = arith.constant 0 : index
    %c0_60 = arith.constant 0 : index
    %92 = vector.load %arg8[%c1_58, %c0_59, %c0_60] : memref<2x32x32xf32, #tpu.memory_space<vmem>>, vector<1x32x32xf32>
    %93 = vector.shape_cast %92 : vector<1x32x32xf32> to vector<32x32xf32>
    %cst_61 = arith.constant dense<0.000000e+00> : vector<64x32xf32>
    %94 = tpu.matmul %91, %93, %cst_61 {dimension_numbers = #tpu.dot_dimension_numbers<[1], [0], [0], [1], [0, 0, 1, 1], [], []>} : vector<64x32xf32>, vector<32x32xf32>, vector<64x32xf32> -> vector<64x32xf32>
    %95 = arith.mulf %94, %3 : vector<64x32xf32>
    %c1_62 = arith.constant 1 : index
    %c0_63 = arith.constant 0 : index
    %c0_64 = arith.constant 0 : index
    %96 = vector.load %arg9[%c1_62, %c0_63, %c0_64] : memref<2x32x32xf32, #tpu.memory_space<vmem>>, vector<1x32x32xf32>
    %97 = vector.shape_cast %96 : vector<1x32x32xf32> to vector<32x32xf32>
    %cst_65 = arith.constant dense<0.000000e+00> : vector<64x32xf32>
    %98 = tpu.matmul %91, %97, %cst_65 {dimension_numbers = #tpu.dot_dimension_numbers<[1], [0], [0], [1], [0, 0, 1, 1], [], []>} : vector<64x32xf32>, vector<32x32xf32>, vector<64x32xf32> -> vector<64x32xf32>
    %99 = arith.mulf %98, %3 : vector<64x32xf32>
    %cst_66 = arith.constant dense<0.000000e+00> : vector<16x64xf32>
    %100 = tpu.matmul %90, %95, %cst_66 {dimension_numbers = #tpu.dot_dimension_numbers<[1], [1], [0], [0], [0, 0, 1, 0], [], []>} : vector<16x32xf32>, vector<64x32xf32>, vector<16x64xf32> -> vector<16x64xf32>
    %101 = arith.addf %100, %1 : vector<16x64xf32>
    %cst_67 = arith.constant dense<0xFF800000> : vector<16xf32>
    %102 = vector.multi_reduction <maximumf>, %101, %cst_67 [1] : vector<16x64xf32> to vector<16xf32>
    %103 = vector.shape_cast %102 : vector<16xf32> to vector<16x1xf32>
    %104 = vector.broadcast %103 : vector<16x1xf32> to vector<16x64xf32>
    %105 = arith.subf %101, %104 : vector<16x64xf32>
    %106 = math.exp %105 : vector<16x64xf32>
    %cst_68 = arith.constant dense<0.000000e+00> : vector<16x64xf32>
    %107 = tpu.matmul %106, %4, %cst_68 {dimension_numbers = #tpu.dot_dimension_numbers<[1], [0], [0], [1], [0, 0, 1, 1], [], []>} : vector<16x64xf32>, vector<64x64xf32>, vector<16x64xf32> -> vector<16x64xf32>
    %cst_69 = arith.constant 1.000000e-30 : f32
    %108 = vector.broadcast %cst_69 : f32 to vector<16x64xf32>
    %109 = arith.maximumf %107, %108 : vector<16x64xf32>
    %110 = tpu.reciprocal %109 {approx = true} : vector<16x64xf32> -> vector<16x64xf32>
    %111 = arith.mulf %106, %110 : vector<16x64xf32>
    %cst_70 = arith.constant dense<0.000000e+00> : vector<16x32xf32>
    %112 = tpu.matmul %111, %99, %cst_70 {dimension_numbers = #tpu.dot_dimension_numbers<[1], [0], [0], [1], [0, 0, 1, 1], [], []>} : vector<16x64xf32>, vector<64x32xf32>, vector<16x32xf32> -> vector<16x32xf32>
    %c1_71 = arith.constant 1 : index
    %c0_72 = arith.constant 0 : index
    %c0_73 = arith.constant 0 : index
    %113 = vector.load %arg10[%c1_71, %c0_72, %c0_73] : memref<2x32x32xf32, #tpu.memory_space<vmem>>, vector<1x32x32xf32>
    %114 = vector.shape_cast %113 : vector<1x32x32xf32> to vector<32x32xf32>
    %cst_74 = arith.constant dense<0.000000e+00> : vector<16x32xf32>
    %115 = tpu.matmul %112, %114, %cst_74 {dimension_numbers = #tpu.dot_dimension_numbers<[1], [0], [0], [1], [0, 0, 1, 1], [], []>} : vector<16x32xf32>, vector<32x32xf32>, vector<16x32xf32> -> vector<16x32xf32>
    %116 = arith.addf %72, %115 : vector<16x32xf32>
    %c1_75 = arith.constant 1 : index
    %c0_76 = arith.constant 0 : index
    %117 = vector.load %arg11[%c1_75, %c0_76] : memref<2x32xf32, #tpu.memory_space<vmem>>, vector<1x32xf32>
    %118 = vector.shape_cast %117 : vector<1x32xf32> to vector<32xf32>
    %119 = arith.mulf %116, %116 : vector<16x32xf32>
    %cst_77 = arith.constant dense<0.000000e+00> : vector<16xf32>
    %120 = vector.multi_reduction <add>, %119, %cst_77 [1] : vector<16x32xf32> to vector<16xf32>
    %121 = vector.shape_cast %120 : vector<16xf32> to vector<16x1xf32>
    %cst_78 = arith.constant 3.200000e+01 : f32
    %122 = vector.broadcast %cst_78 : f32 to vector<16x1xf32>
    %123 = arith.divf %121, %122 : vector<16x1xf32>
    %cst_79 = arith.constant 9.99999997E-7 : f32
    %124 = vector.broadcast %cst_79 : f32 to vector<16x1xf32>
    %125 = arith.addf %123, %124 : vector<16x1xf32>
    %126 = math.rsqrt %125 : vector<16x1xf32>
    %127 = vector.broadcast %126 : vector<16x1xf32> to vector<16x32xf32>
    %128 = arith.mulf %116, %127 : vector<16x32xf32>
    %129 = vector.shape_cast %118 : vector<32xf32> to vector<1x32xf32>
    %130 = vector.broadcast %129 : vector<1x32xf32> to vector<16x32xf32>
    %131 = arith.mulf %128, %130 : vector<16x32xf32>
    %c1_80 = arith.constant 1 : index
    %c0_81 = arith.constant 0 : index
    %c0_82 = arith.constant 0 : index
    %132 = vector.load %arg12[%c1_80, %c0_81, %c0_82] : memref<2x32x64xf32, #tpu.memory_space<vmem>>, vector<1x32x64xf32>
    %133 = vector.shape_cast %132 : vector<1x32x64xf32> to vector<32x64xf32>
    %cst_83 = arith.constant dense<0.000000e+00> : vector<16x64xf32>
    %134 = tpu.matmul %131, %133, %cst_83 {dimension_numbers = #tpu.dot_dimension_numbers<[1], [0], [0], [1], [0, 0, 1, 1], [], []>} : vector<16x32xf32>, vector<32x64xf32>, vector<16x64xf32> -> vector<16x64xf32>
    %cst_84 = arith.constant 0.000000e+00 : f32
    %135 = vector.broadcast %cst_84 : f32 to vector<16x64xf32>
    %136 = arith.maximumf %134, %135 : vector<16x64xf32>
    %c1_85 = arith.constant 1 : index
    %c0_86 = arith.constant 0 : index
    %c0_87 = arith.constant 0 : index
    %137 = vector.load %arg13[%c1_85, %c0_86, %c0_87] : memref<2x64x32xf32, #tpu.memory_space<vmem>>, vector<1x64x32xf32>
    %138 = vector.shape_cast %137 : vector<1x64x32xf32> to vector<64x32xf32>
    %cst_88 = arith.constant dense<0.000000e+00> : vector<16x32xf32>
    %139 = tpu.matmul %136, %138, %cst_88 {dimension_numbers = #tpu.dot_dimension_numbers<[1], [0], [0], [1], [0, 0, 1, 1], [], []>} : vector<16x64xf32>, vector<64x32xf32>, vector<16x32xf32> -> vector<16x32xf32>
    %140 = arith.addf %116, %139 : vector<16x32xf32>
    %c0_89 = arith.constant 0 : index
    %c0_90 = arith.constant 0 : index
    %141 = vector.load %arg14[%c0_89, %c0_90] : memref<1x32xf32, #tpu.memory_space<vmem>>, vector<1x32xf32>
    %142 = arith.mulf %140, %140 : vector<16x32xf32>
    %cst_91 = arith.constant dense<0.000000e+00> : vector<16xf32>
    %143 = vector.multi_reduction <add>, %142, %cst_91 [1] : vector<16x32xf32> to vector<16xf32>
    %144 = vector.shape_cast %143 : vector<16xf32> to vector<16x1xf32>
    %cst_92 = arith.constant 3.200000e+01 : f32
    %145 = vector.broadcast %cst_92 : f32 to vector<16x1xf32>
    %146 = arith.divf %144, %145 : vector<16x1xf32>
    %cst_93 = arith.constant 9.99999997E-7 : f32
    %147 = vector.broadcast %cst_93 : f32 to vector<16x1xf32>
    %148 = arith.addf %146, %147 : vector<16x1xf32>
    %149 = math.rsqrt %148 : vector<16x1xf32>
    %150 = vector.broadcast %149 : vector<16x1xf32> to vector<16x32xf32>
    %151 = arith.mulf %140, %150 : vector<16x32xf32>
    %152 = vector.broadcast %141 : vector<1x32xf32> to vector<16x32xf32>
    %153 = arith.mulf %151, %152 : vector<16x32xf32>
    %c0_94 = arith.constant 0 : index
    %c0_95 = arith.constant 0 : index
    %154 = vector.load %arg5[%c0_94, %c0_95] : memref<32x128xf32, #tpu.memory_space<vmem>>, vector<32x128xf32>
    %cst_96 = arith.constant dense<0.000000e+00> : vector<16x128xf32>
    %155 = tpu.matmul %153, %154, %cst_96 {dimension_numbers = #tpu.dot_dimension_numbers<[1], [0], [0], [1], [0, 0, 1, 1], [], []>} : vector<16x32xf32>, vector<32x128xf32>, vector<16x128xf32> -> vector<16x128xf32>
    %c0_97 = arith.constant 0 : index
    %c0_98 = arith.constant 0 : index
    %156 = vector.load %arg15[%c0_97, %c0_98] : memref<16x128xf32, #tpu.memory_space<vmem>>, vector<16x128xf32>
    tpu.vector_store %arg15[%c0_97, %c0_98], %155 {strides = array<i32>} : memref<16x128xf32, #tpu.memory_space<vmem>>, vector<16x128xf32>,
    return
  }
}

</mosaic_0001>

<llo_original>
// kernel: tpu_custom_call.1
$region0: #{tpu_custom_call.1}
  #allocation0 [shape = 'u32[]', space=smem, size = 0x4, offset = 0x4, fixed_abs, tag = 'smem constant byte address 0x4 - core index']
  #allocation1 [shape = 'u32[144,128]{1,0:T(1,128)}', space=vmem, size = 0x12000, scoped, tag = 'internal scratch']
  %s0 = inlined_call_operand.hbm [shape: f32[16,32], index: 0, kind: input, shape index: {}]
  %s1 = inlined_call_operand.hbm [shape: f32[16,64], index: 1, kind: input, shape index: {}]
  %s2 = inlined_call_operand.vmem [shape: f32[64,16], index: 2, kind: input, shape index: {}]
  %s3 = inlined_call_operand.vmem [shape: f32[64,32], index: 3, kind: input, shape index: {}]
  %s4 = inlined_call_operand.vmem [shape: f32[64,64], index: 4, kind: input, shape index: {}]
  %s5 = inlined_call_operand.hbm [shape: f32[32,128], index: 5, kind: input, shape index: {}]
  %s6 = inlined_call_operand.vmem [shape: f32[2,32], index: 6, kind: input, shape index: {}]
  %s7 = inlined_call_operand.vmem [shape: f32[2,32,32], index: 7, kind: input, shape index: {}]
  %s8 = inlined_call_operand.vmem [shape: f32[2,32,32], index: 8, kind: input, shape index: {}]
  %s9 = inlined_call_operand.vmem [shape: f32[2,32,32], index: 9, kind: input, shape index: {}]
  %s10 = inlined_call_operand.vmem [shape: f32[2,32,32], index: 10, kind: input, shape index: {}]
  %s11 = inlined_call_operand.vmem [shape: f32[2,32], index: 11, kind: input, shape index: {}]
  %s12 = inlined_call_operand.hbm [shape: f32[2,32,64], index: 12, kind: input, shape index: {}]
  %s13 = inlined_call_operand.vmem [shape: f32[2,64,32], index: 13, kind: input, shape index: {}]
  %s14 = inlined_call_operand.vmem [shape: f32[1,32], index: 14, kind: input, shape index: {}]
  %s15 = inlined_call_operand.hbm [shape: f32[16,128], index: 15, kind: output, shape index: {}]
  %s16 = sld [smem:[#allocation0]]
  $region86: #{tpu_custom_call.1} parent=0
    _
  %s18 = ssub.s32 1, %s16
  %s19 = scalar_select 0, %s18, %s16
  $region1: #{tpu_custom_call.1} parent=0
    #allocation2 [shape = 'u8[8192]{0}', space=vmem, size = 0x2000, scoped, tag = 'input window, operand 0, single buffered']
    #allocation3 [shape = 's32[1]{0}', space=sflag, size = 0x4, scoped, tag = 'scoped memory for tpu_custom_call.1']
    #allocation4 [shape = 's32[1]{0}', space=sflag, size = 0x4, scoped, tag = 'scoped memory for tpu_custom_call.1']
    #allocation5 [shape = 'u8[8192]{0}', space=vmem, size = 0x2000, scoped, tag = 'input window, operand 1, single buffered']
    #allocation6 [shape = 's32[1]{0}', space=sflag, size = 0x4, scoped, tag = 'scoped memory for tpu_custom_call.1']
    #allocation7 [shape = 'u8[16384]{0}', space=vmem, size = 0x4000, scoped, tag = 'input window, operand 5, single buffered']
    #allocation8 [shape = 'u8[32768]{0}', space=vmem, size = 0x8000, scoped, tag = 'input window, operand 12, single buffered']
    #allocation9 [shape = 's32[1]{0}', space=sflag, size = 0x4, scoped, tag = 'scoped memory for tpu_custom_call.1']
    #allocation10 [shape = 'u8[8192]{0}', space=vmem, size = 0x2000, scoped, tag = 'output window, operand 0, single buffered']
    %20 = vsyncpa [#allocation3], 0
    %21 = vsyncpa [#allocation6], 0
    %22 = vsyncpa [#allocation9], 0
    %23 = vsyncpa [#allocation4], 0
    // Predicated region
    $region2: #{tpu_custom_call.1} parent=1 // pred_check
      _
    $region3: #{tpu_custom_call.1} parent=1 // pred_check_branch
      %25 = sbr.rel (0) target = $region5
    $region4: #{tpu_custom_call.1} parent=1 // pred_region
      %s27 = ssub.s32 256, 256
      %28 = vsyncadd [#allocation3], %s27
      %s29 = sshll.u32 [#allocation2], 4
      %s30 = int_to_ptr.vmem [resolvable:$true] %s29
      %35 = dma.hbm_to_vmem [thread:$0]  %s0, 256, %s30, [#allocation3], 128, 128, 8
    $region5: #{tpu_custom_call.1} parent=1 // pred_fallthru
      _
    // Predicated region
    $region6: #{tpu_custom_call.1} parent=1 // pred_check
      _
    $region7: #{tpu_custom_call.1} parent=1 // pred_check_branch
      %37 = sbr.rel (0) target = $region9
    $region8: #{tpu_custom_call.1} parent=1 // pred_region
      %s39 = ssub.s32 256, 256
      %40 = vsyncadd [#allocation6], %s39
      %s41 = sshll.u32 [#allocation5], 4
      %s42 = int_to_ptr.vmem [resolvable:$true] %s41
      %47 = dma.hbm_to_vmem [thread:$0]  %s1, 256, %s42, [#allocation6], 128, 128, 8
    $region9: #{tpu_custom_call.1} parent=1 // pred_fallthru
      _
    // Predicated region
    $region10: #{tpu_custom_call.1} parent=1 // pred_check
      _
    $region11: #{tpu_custom_call.1} parent=1 // pred_check_branch
      %49 = sbr.rel (0) target = $region13
    $region12: #{tpu_custom_call.1} parent=1 // pred_region
      _
    $region13: #{tpu_custom_call.1} parent=1 // pred_fallthru
      _
    // Predicated region
    $region14: #{tpu_custom_call.1} parent=1 // pred_check
      _
    $region15: #{tpu_custom_call.1} parent=1 // pred_check_branch
      %51 = sbr.rel (0) target = $region17
    $region16: #{tpu_custom_call.1} parent=1 // pred_region
      _
    $region17: #{tpu_custom_call.1} parent=1 // pred_fallthru
      _
    // Predicated region
    $region18: #{tpu_custom_call.1} parent=1 // pred_check
      _
    $region19: #{tpu_custom_call.1} parent=1 // pred_check_branch
      %53 = sbr.rel (0) target = $region21
    $region20: #{tpu_custom_call.1} parent=1 // pred_region
      _
    $region21: #{tpu_custom_call.1} parent=1 // pred_fallthru
      _
    // Predicated region
    $region22: #{tpu_custom_call.1} parent=1 // pred_check
      _
    $region23: #{tpu_custom_call.1} parent=1 // pred_check_branch
      %55 = sbr.rel (0) target = $region25
    $region24: #{tpu_custom_call.1} parent=1 // pred_region
      %s57 = ssub.s32 512, 512
      %58 = vsyncadd [#allocation6], %s57
      %s59 = sshll.u32 [#allocation7], 4
      %s60 = int_to_ptr.vmem [resolvable:$true] %s59
      %65 = dma.hbm_to_vmem [thread:$0]  %s5, 512, %s60, [#allocation6], 128, 128, 8
    $region25: #{tpu_custom_call.1} parent=1 // pred_fallthru
      _
    // Predicated region
    $region26: #{tpu_custom_call.1} parent=1 // pred_check
      _
    $region27: #{tpu_custom_call.1} parent=1 // pred_check_branch
      %67 = sbr.rel (0) target = $region29
    $region28: #{tpu_custom_call.1} parent=1 // pred_region
      _
    $region29: #{tpu_custom_call.1} parent=1 // pred_fallthru
      _
    // Predicated region
    $region30: #{tpu_custom_call.1} parent=1 // pred_check
      _
    $region31: #{tpu_custom_call.1} parent=1 // pred_check_branch
      %69 = sbr.rel (0) target = $region33
    $region32: #{tpu_custom_call.1} parent=1 // pred_region
      _
    $region33: #{tpu_custom_call.1} parent=1 // pred_fallthru
      _
    // Predicated region
    $region34: #{tpu_custom_call.1} parent=1 // pred_check
      _
    $region35: #{tpu_custom_call.1} parent=1 // pred_check_branch
      %71 = sbr.rel (0) target = $region37
    $region36: #{tpu_custom_call.1} parent=1 // pred_region
      _
    $region37: #{tpu_custom_call.1} parent=1 // pred_fallthru
      _
    // Predicated region
    $region38: #{tpu_custom_call.1} parent=1 // pred_check
      _
    $region39: #{tpu_custom_call.1} parent=1 // pred_check_branch
      %73 = sbr.rel (0) target = $region41
    $region40: #{tpu_custom_call.1} parent=1 // pred_region
      _
    $region41: #{tpu_custom_call.1} parent=1 // pred_fallthru
      _
    // Predicated region
    $region42: #{tpu_custom_call.1} parent=1 // pred_check
      _
    $region43: #{tpu_custom_call.1} parent=1 // pred_check_branch
      %75 = sbr.rel (0) target = $region45
    $region44: #{tpu_custom_call.1} parent=1 // pred_region
      _
    $region45: #{tpu_custom_call.1} parent=1 // pred_fallthru
      _
    // Predicated region
    $region46: #{tpu_custom_call.1} parent=1 // pred_check
      _
    $region47: #{tpu_custom_call.1} parent=1 // pred_check_branch
      %77 = sbr.rel (0) target = $region49
    $region48: #{tpu_custom_call.1} parent=1 // pred_region
      _
    $region49: #{tpu_custom_call.1} parent=1 // pred_fallthru
      _
    // Predicated region
    $region50: #{tpu_custom_call.1} parent=1 // pred_check
      _
    $region51: #{tpu_custom_call.1} parent=1 // pred_check_branch
      %79 = sbr.rel (0) target = $region53
    $region52: #{tpu_custom_call.1} parent=1 // pred_region
      %s81 = ssub.s32 1024, 1024
      %82 = vsyncadd [#allocation9], %s81
      %s83 = sshll.u32 [#allocation8], 4
      %s84 = int_to_ptr.vmem [resolvable:$true] %s83
      %89 = dma.hbm_to_vmem [thread:$0]  %s12, 1024, %s84, [#allocation9], 128, 128, 8
    $region53: #{tpu_custom_call.1} parent=1 // pred_fallthru
      _
    // Predicated region
    $region54: #{tpu_custom_call.1} parent=1 // pred_check
      _
    $region55: #{tpu_custom_call.1} parent=1 // pred_check_branch
      %91 = sbr.rel (0) target = $region57
    $region56: #{tpu_custom_call.1} parent=1 // pred_region
      _
    $region57: #{tpu_custom_call.1} parent=1 // pred_fallthru
      _
    // Predicated region
    $region58: #{tpu_custom_call.1} parent=1 // pred_check
      _
    $region59: #{tpu_custom_call.1} parent=1 // pred_check_branch
      %93 = sbr.rel (0) target = $region61
    $region60: #{tpu_custom_call.1} parent=1 // pred_region
      _
    $region61: #{tpu_custom_call.1} parent=1 // pred_fallthru
      _
    // Predicated region
    $region62: #{tpu_custom_call.1} parent=1 // pred_check
      _
    $region63: #{tpu_custom_call.1} parent=1 // pred_check_branch
      %95 = sbr.rel (0) target = $region65
    $region64: #{tpu_custom_call.1} parent=1 // pred_region
      %96 = dma.done [#allocation3], 256
    $region65: #{tpu_custom_call.1} parent=1 // pred_fallthru
      _
    // Predicated region
    $region66: #{tpu_custom_call.1} parent=1 // pred_check
      _
    $region67: #{tpu_custom_call.1} parent=1 // pred_check_branch
      %98 = sbr.rel (0) target = $region69
    $region68: #{tpu_custom_call.1} parent=1 // pred_region
      %99 = dma.done [#allocation6], 256
    $region69: #{tpu_custom_call.1} parent=1 // pred_fallthru
      _
    // Predicated region
    $region70: #{tpu_custom_call.1} parent=1 // pred_check
      _
    $region71: #{tpu_custom_call.1} parent=1 // pred_check_branch
      %101 = sbr.rel (0) target = $region73
    $region72: #{tpu_custom_call.1} parent=1 // pred_region
      %102 = dma.done [#allocation6], 512
    $region73: #{tpu_custom_call.1} parent=1 // pred_fallthru
      _
    // Predicated region
    $region74: #{tpu_custom_call.1} parent=1 // pred_check
      _
    $region75: #{tpu_custom_call.1} parent=1 // pred_check_branch
      %104 = sbr.rel (0) target = $region77
    $region76: #{tpu_custom_call.1} parent=1 // pred_region
      %105 = dma.done [#allocation9], 1024
    $region77: #{tpu_custom_call.1} parent=1 // pred_fallthru
      _
    %v106 = vld [vmem:[#allocation2] sm:$0xff]
    %v107 = vld [vmem:[#allocation2 + $0x8] sm:$0xff]
    %v108 = vld [vmem:[#allocation5] sm:$0xff]
    %v109 = vld [vmem:[#allocation5 + $0x8] sm:$0xff]
    %v110 = vld [vmem:[%s2] sm:$0xff]
    %v111 = vld [vmem:[%s2 + $0x8] sm:$0xff]
    %v112 = vld [vmem:[%s2 + $0x10] sm:$0xff]
    %v113 = vld [vmem:[%s2 + $0x18] sm:$0xff]
    %v114 = vld [vmem:[%s2 + $0x20] sm:$0xff]
    %v115 = vld [vmem:[%s2 + $0x28] sm:$0xff]
    %v116 = vld [vmem:[%s2 + $0x30] sm:$0xff]
    %v117 = vld [vmem:[%s2 + $0x38] sm:$0xff]
    %v118 = vld [vmem:[%s3] sm:$0xff]
    %v119 = vld [vmem:[%s3 + $0x8] sm:$0xff]
    %v120 = vld [vmem:[%s3 + $0x10] sm:$0xff]
    %v121 = vld [vmem:[%s3 + $0x18] sm:$0xff]
    %v122 = vld [vmem:[%s3 + $0x20] sm:$0xff]
    %v123 = vld [vmem:[%s3 + $0x28] sm:$0xff]
    %v124 = vld [vmem:[%s3 + $0x30] sm:$0xff]
    %v125 = vld [vmem:[%s3 + $0x38] sm:$0xff]
    %v126 = vld [vmem:[%s4] sm:$0xff]
    %v127 = vld [vmem:[%s4 + $0x8] sm:$0xff]
    %v128 = vld [vmem:[%s4 + $0x10] sm:$0xff]
    %v129 = vld [vmem:[%s4 + $0x18] sm:$0xff]
    %v130 = vld [vmem:[%s4 + $0x20] sm:$0xff]
    %v131 = vld [vmem:[%s4 + $0x28] sm:$0xff]
    %v132 = vld [vmem:[%s4 + $0x30] sm:$0xff]
    %v133 = vld [vmem:[%s4 + $0x38] sm:$0xff]
    %v134 = vld [vmem:[%s6] sm:$0x1]
    %v135 = vmul.f32 %v106, %v106
    %v136 = vmul.f32 %v107, %v107
    %vm137 = vcmask 261120
    %v138 = vsel %vm137, %v135, 0.0
    %139 = vadd.xlane.f32.xlu0 %v138
    %v140 = vpop.xlane.xlu0 %139
    %v141 = vsel %vm137, %v136, 0.0
    %142 = vadd.xlane.f32.xlu0 %v141
    %v143 = vpop.xlane.xlu0 %142
    %v144 = vrcp.pop 32.0
    %v145 = vmul.f32 %v140, %v144
    %v146 = vmul.f32 %v143, %v144
    %v147 = vadd.f32 %v145, 1e-06
    %v148 = vadd.f32 %v146, 1e-06
    %v149 = vrsqrt.pop %v147
    %v150 = vrsqrt.pop %v148
    %v151 = vmul.f32 %v106, %v149
    %v152 = vmul.f32 %v107, %v150
    %v153 = vlaneseq
    %v154 = vshrl.u32 %v153, 7
    %v155 = vsub.s32 0, %v154
    %v156 = vrot.slane %v134, %v155
    %v157 = vmul.f32 %v151, %v156
    %v158 = vmul.f32 %v152, %v156
    %v159 = vld [vmem:[%s7] sm:$0xff]
    %v160 = vld [vmem:[%s7 + $0x8] sm:$0xff]
    %v161 = vld [vmem:[%s7 + $0x10] sm:$0xff]
    %v162 = vld [vmem:[%s7 + $0x18] sm:$0xff]
    %v164 = vsel %vm137, %v157, 0
    %v167 = vsel %vm137, %v158, 0
    %169 = vmatprep.subr.mxu0 0.0
    %170 = vmatpush1.msra.mxu0 %v159
    %171 = vmatprep.subr.mxu0 0.0
    %172 = vmatpush1.msra.mxu0 %v160
    %173 = vmatprep.subr.mxu0 0.0
    %174 = vmatpush1.msra.mxu0 %v161
    %175 = vmatprep.subr.mxu0 0.0
    %176 = vmatpush1.msra.mxu0 %v162
    %177 = vmatprep.subr.mxu0 0.0
    %178 = vmatpush1.msra.mxu0 0.0
    %179 = vmatprep.subr.mxu0 0.0
    %180 = vmatpush1.msra.mxu0 0.0
    %181 = vmatprep.subr.mxu0 0.0
    %182 = vmatpush1.msra.mxu0 0.0
    %183 = vmatprep.subr.mxu0 0.0
    %184 = vmatpush1.msra.mxu0 0.0
    %185 = vmatprep.subr.mxu0 0.0
    %186 = vmatpush1.msra.mxu0 0.0
    %187 = vmatprep.subr.mxu0 0.0
    %188 = vmatpush1.msra.mxu0 0.0
    %189 = vmatprep.subr.mxu0 0.0
    %190 = vmatpush1.msra.mxu0 0.0
    %191 = vmatprep.subr.mxu0 0.0
    %192 = vmatpush1.msra.mxu0 0.0
    %193 = vmatprep.subr.mxu0 0.0
    %194 = vmatpush1.msra.mxu0 0.0
    %195 = vmatprep.subr.mxu0 0.0
    %196 = vmatpush1.msra.mxu0 0.0
    %197 = vmatprep.subr.mxu0 0.0
    %198 = vmatpush1.msra.mxu0 0.0
    %199 = vmatprep.subr.mxu0 0.0
    %200 = vmatpush1.msra.mxu0 0.0
    %201 = vmatprep.subr.mxu0 0.0
    %202 = vmatpush1.msra.mxu0 0.0
    %203 = vmatprep.subr.mxu0 0.0
    %204 = vmatpush1.msra.mxu0 0.0
    %205 = vmatprep.subr.mxu0 0.0
    %206 = vmatpush1.msra.mxu0 0.0
    %207 = vmatprep.subr.mxu0 0.0
    %208 = vmatpush1.msra.mxu0 0.0
    %209 = vmatprep.subr.mxu0 0.0
    %210 = vmatpush1.msra.mxu0 0.0
    %211 = vmatprep.subr.mxu0 0.0
    %212 = vmatpush1.msra.mxu0 0.0
    %213 = vmatprep.subr.mxu0 0.0
    %214 = vmatpush1.msra.mxu0 0.0
    %215 = vmatprep.subr.mxu0 0.0
    %216 = vmatpush1.msra.mxu0 0.0
    %217 = vmatprep.subr.mxu0 0.0
    %218 = vmatpush1.msra.mxu0 0.0
    %219 = vmatprep.subr.mxu0 0.0
    %220 = vmatpush1.msra.mxu0 0.0
    %221 = vmatprep.subr.mxu0 0.0
    %222 = vmatpush1.msra.mxu0 0.0
    %223 = vmatprep.subr.mxu0 0.0
    %224 = vmatpush1.msra.mxu0 0.0
    %225 = vmatprep.subr.mxu0 0.0
    %226 = vmatpush1.msra.mxu0 0.0
    %227 = vmatprep.subr.mxu0 0.0
    %228 = vmatpush1.msra.mxu0 0.0
    %229 = vmatprep.subr.mxu0 0.0
    %230 = vmatpush1.msra.mxu0 0.0
    %231 = vmatprep.subr.mxu0 0.0
    %232 = vmatpush1.msra.mxu0 0.0
    %233 = vmatprep.mubr.f32.mxu0 0.0
    %234 = vmatmul.mubr.f32.gmra.mrb[0].mxu0 %v164
    %v235 = vpop.f32.mrb[0].mxu0
    %v236 = vadd.f32 0.0, %v235
    %v237 = vpop.f32.mrb[0].mxu0
    %238 = vmatprep.mubr.f32.mxu0 0.0
    %239 = vmatmul.mubr.f32.gmra.mrb[0].mxu0 %v167
    %v240 = vpop.f32.mrb[0].mxu0
    %v241 = vadd.f32 0.0, %v240
    %v242 = vpop.f32.mrb[0].mxu0
    %243 = vdwg.mxu0
    %vm244 = vcmask 130048
    %v246 = vsel %vm244, %v110, 0
    %v249 = vsel %vm244, %v111, 0
    %v252 = vsel %vm244, %v112, 0
    %v255 = vsel %vm244, %v113, 0
    %v258 = vsel %vm244, %v114, 0
    %v261 = vsel %vm244, %v115, 0
    %v264 = vsel %vm244, %v116, 0
    %v267 = vsel %vm244, %v117, 0
    %269 = vmatprep.subr.mxu0 0.0
    %270 = vmatpush1.msra.mxu0 %v157
    %271 = vmatprep.subr.mxu0 0.0
    %272 = vmatpush1.msra.mxu0 %v158
    %273 = vmatprep.subr.mxu0 0.0
    %274 = vmatpush1.msra.mxu0 0.0
    %275 = vmatprep.subr.mxu0 0.0
    %276 = vmatpush1.msra.mxu0 0.0
    %277 = vmatprep.subr.mxu0 0.0
    %278 = vmatpush1.msra.mxu0 0.0
    %279 = vmatprep.subr.mxu0 0.0
    %280 = vmatpush1.msra.mxu0 0.0
    %281 = vmatprep.subr.mxu0 0.0
    %282 = vmatpush1.msra.mxu0 0.0
    %283 = vmatprep.subr.mxu0 0.0
    %284 = vmatpush1.msra.mxu0 0.0
    %285 = vmatprep.subr.mxu0 0.0
    %286 = vmatpush1.msra.mxu0 0.0
    %287 = vmatprep.subr.mxu0 0.0
    %288 = vmatpush1.msra.mxu0 0.0
    %289 = vmatprep.subr.mxu0 0.0
    %290 = vmatpush1.msra.mxu0 0.0
    %291 = vmatprep.subr.mxu0 0.0
    %292 = vmatpush1.msra.mxu0 0.0
    %293 = vmatprep.subr.mxu0 0.0
    %294 = vmatpush1.msra.mxu0 0.0
    %295 = vmatprep.subr.mxu0 0.0
    %296 = vmatpush1.msra.mxu0 0.0
    %297 = vmatprep.subr.mxu0 0.0
    %298 = vmatpush1.msra.mxu0 0.0
    %299 = vmatprep.subr.mxu0 0.0
    %300 = vmatpush1.msra.mxu0 0.0
    %301 = vmatprep.subr.mxu0 0.0
    %302 = vmatpush1.msra.mxu0 0.0
    %303 = vmatprep.subr.mxu0 0.0
    %304 = vmatpush1.msra.mxu0 0.0
    %305 = vmatprep.subr.mxu0 0.0
    %306 = vmatpush1.msra.mxu0 0.0
    %307 = vmatprep.subr.mxu0 0.0
    %308 = vmatpush1.msra.mxu0 0.0
    %309 = vmatprep.subr.mxu0 0.0
    %310 = vmatpush1.msra.mxu0 0.0
    %311 = vmatprep.subr.mxu0 0.0
    %312 = vmatpush1.msra.mxu0 0.0
    %313 = vmatprep.subr.mxu0 0.0
    %314 = vmatpush1.msra.mxu0 0.0
    %315 = vmatprep.subr.mxu0 0.0
    %316 = vmatpush1.msra.mxu0 0.0
    %317 = vmatprep.subr.mxu0 0.0
    %318 = vmatpush1.msra.mxu0 0.0
    %319 = vmatprep.subr.mxu0 0.0
    %320 = vmatpush1.msra.mxu0 0.0
    %321 = vmatprep.subr.mxu0 0.0
    %322 = vmatpush1.msra.mxu0 0.0
    %323 = vmatprep.subr.mxu0 0.0
    %324 = vmatpush1.msra.mxu0 0.0
    %325 = vmatprep.subr.mxu0 0.0
    %326 = vmatpush1.msra.mxu0 0.0
    %327 = vmatprep.subr.mxu0 0.0
    %328 = vmatpush1.msra.mxu0 0.0
    %329 = vmatprep.subr.mxu0 0.0
    %330 = vmatpush1.msra.mxu0 0.0
    %331 = vmatprep.subr.mxu0 0.0
    %332 = vmatpush1.msra.mxu0 0.0
    %333 = vmatprep.mubr.f32.mxu0 0.0
    %334 = vmatmul.mubr.f32.gmra.mrb[0].mxu0 %v246
    %v335 = vpop.f32.mrb[0].mxu0
    %v336 = vadd.f32 0.0, %v335
    %v337 = vpop.f32.mrb[0].mxu0
    %338 = vmatprep.mubr.f32.mxu0 0.0
    %339 = vmatmul.mubr.f32.gmra.mrb[0].mxu0 %v249
    %v340 = vpop.f32.mrb[0].mxu0
    %v341 = vadd.f32 0.0, %v340
    %v342 = vpop.f32.mrb[0].mxu0
    %343 = vmatprep.mubr.f32.mxu0 0.0
    %344 = vmatmul.mubr.f32.gmra.mrb[0].mxu0 %v252
    %v345 = vpop.f32.mrb[0].mxu0
    %v346 = vadd.f32 0.0, %v345
    %v347 = vpop.f32.mrb[0].mxu0
    %348 = vmatprep.mubr.f32.mxu0 0.0
    %349 = vmatmul.mubr.f32.gmra.mrb[0].mxu0 %v255
    %v350 = vpop.f32.mrb[0].mxu0
    %v351 = vadd.f32 0.0, %v350
    %v352 = vpop.f32.mrb[0].mxu0
    %353 = vmatprep.mubr.f32.mxu0 0.0
    %354 = vmatmul.mubr.f32.gmra.mrb[0].mxu0 %v258
    %v355 = vpop.f32.mrb[0].mxu0
    %v356 = vadd.f32 0.0, %v355
    %v357 = vpop.f32.mrb[0].mxu0
    %358 = vmatprep.mubr.f32.mxu0 0.0
    %359 = vmatmul.mubr.f32.gmra.mrb[0].mxu0 %v261
    %v360 = vpop.f32.mrb[0].mxu0
    %v361 = vadd.f32 0.0, %v360
    %v362 = vpop.f32.mrb[0].mxu0
    %363 = vmatprep.mubr.f32.mxu0 0.0
    %364 = vmatmul.mubr.f32.gmra.mrb[0].mxu0 %v264
    %v365 = vpop.f32.mrb[0].mxu0
    %v366 = vadd.f32 0.0, %v365
    %v367 = vpop.f32.mrb[0].mxu0
    %368 = vmatprep.mubr.f32.mxu0 0.0
    %369 = vmatmul.mubr.f32.gmra.mrb[0].mxu0 %v267
    %v370 = vpop.f32.mrb[0].mxu0
    %v371 = vadd.f32 0.0, %v370
    %v372 = vpop.f32.mrb[0].mxu0
    %373 = vdwg.mxu0
    %v374 = vld [vmem:[%s8] sm:$0xff]
    %v375 = vld [vmem:[%s8 + $0x8] sm:$0xff]
    %v376 = vld [vmem:[%s8 + $0x10] sm:$0xff]
    %v377 = vld [vmem:[%s8 + $0x18] sm:$0xff]
    %v379 = vsel %vm137, %v336, 0
    %v382 = vsel %vm137, %v341, 0
    %v385 = vsel %vm137, %v346, 0
    %v388 = vsel %vm137, %v351, 0
    %v391 = vsel %vm137, %v356, 0
    %v394 = vsel %vm137, %v361, 0
    %v397 = vsel %vm137, %v366, 0
    %v400 = vsel %vm137, %v371, 0
    %402 = vmatprep.subr.mxu0 0.0
    %403 = vmatpush1.msra.mxu0 %v374
    %404 = vmatprep.subr.mxu0 0.0
    %405 = vmatpush1.msra.mxu0 %v375
    %406 = vmatprep.subr.mxu0 0.0
    %407 = vmatpush1.msra.mxu0 %v376
    %408 = vmatprep.subr.mxu0 0.0
    %409 = vmatpush1.msra.mxu0 %v377
    %410 = vmatprep.subr.mxu0 0.0
    %411 = vmatpush1.msra.mxu0 0.0
    %412 = vmatprep.subr.mxu0 0.0
    %413 = vmatpush1.msra.mxu0 0.0
    %414 = vmatprep.subr.mxu0 0.0
    %415 = vmatpush1.msra.mxu0 0.0
    %416 = vmatprep.subr.mxu0 0.0
    %417 = vmatpush1.msra.mxu0 0.0
    %418 = vmatprep.subr.mxu0 0.0
    %419 = vmatpush1.msra.mxu0 0.0
    %420 = vmatprep.subr.mxu0 0.0
    %421 = vmatpush1.msra.mxu0 0.0
    %422 = vmatprep.subr.mxu0 0.0
    %423 = vmatpush1.msra.mxu0 0.0
    %424 = vmatprep.subr.mxu0 0.0
    %425 = vmatpush1.msra.mxu0 0.0
    %426 = vmatprep.subr.mxu0 0.0
    %427 = vmatpush1.msra.mxu0 0.0
    %428 = vmatprep.subr.mxu0 0.0
    %429 = vmatpush1.msra.mxu0 0.0
    %430 = vmatprep.subr.mxu0 0.0
    %431 = vmatpush1.msra.mxu0 0.0
    %432 = vmatprep.subr.mxu0 0.0
    %433 = vmatpush1.msra.mxu0 0.0
    %434 = vmatprep.subr.mxu0 0.0
    %435 = vmatpush1.msra.mxu0 0.0
    %436 = vmatprep.subr.mxu0 0.0
    %437 = vmatpush1.msra.mxu0 0.0
    %438 = vmatprep.subr.mxu0 0.0
    %439 = vmatpush1.msra.mxu0 0.0
    %440 = vmatprep.subr.mxu0 0.0
    %441 = vmatpush1.msra.mxu0 0.0
    %442 = vmatprep.subr.mxu0 0.0
    %443 = vmatpush1.msra.mxu0 0.0
    %444 = vmatprep.subr.mxu0 0.0
    %445 = vmatpush1.msra.mxu0 0.0
    %446 = vmatprep.subr.mxu0 0.0
    %447 = vmatpush1.msra.mxu0 0.0
    %448 = vmatprep.subr.mxu0 0.0
    %449 = vmatpush1.msra.mxu0 0.0
    %450 = vmatprep.subr.mxu0 0.0
    %451 = vmatpush1.msra.mxu0 0.0
    %452 = vmatprep.subr.mxu0 0.0
    %453 = vmatpush1.msra.mxu0 0.0
    %454 = vmatprep.subr.mxu0 0.0
    %455 = vmatpush1.msra.mxu0 0.0
    %456 = vmatprep.subr.mxu0 0.0
    %457 = vmatpush1.msra.mxu0 0.0
    %458 = vmatprep.subr.mxu0 0.0
    %459 = vmatpush1.msra.mxu0 0.0
    %460 = vmatprep.subr.mxu0 0.0
    %461 = vmatpush1.msra.mxu0 0.0
    %462 = vmatprep.subr.mxu0 0.0
    %463 = vmatpush1.msra.mxu0 0.0
    %464 = vmatprep.subr.mxu0 0.0
    %465 = vmatpush1.msra.mxu0 0.0
    %466 = vmatprep.mubr.f32.mxu0 0.0
    %467 = vmatmul.mubr.f32.gmra.mrb[0].mxu0 %v379
    %v468 = vpop.f32.mrb[0].mxu0
    %v469 = vadd.f32 0.0, %v468
    %v470 = vpop.f32.mrb[0].mxu0
    %471 = vmatprep.mubr.f32.mxu0 0.0
    %472 = vmatmul.mubr.f32.gmra.mrb[0].mxu0 %v382
    %v473 = vpop.f32.mrb[0].mxu0
    %v474 = vadd.f32 0.0, %v473
    %v475 = vpop.f32.mrb[0].mxu0
    %476 = vmatprep.mubr.f32.mxu0 0.0
    %477 = vmatmul.mubr.f32.gmra.mrb[0].mxu0 %v385
    %v478 = vpop.f32.mrb[0].mxu0
    %v479 = vadd.f32 0.0, %v478
    %v480 = vpop.f32.mrb[0].mxu0
    %481 = vmatprep.mubr.f32.mxu0 0.0
    %482 = vmatmul.mubr.f32.gmra.mrb[0].mxu0 %v388
    %v483 = vpop.f32.mrb[0].mxu0
    %v484 = vadd.f32 0.0, %v483
    %v485 = vpop.f32.mrb[0].mxu0
    %486 = vmatprep.mubr.f32.mxu0 0.0
    %487 = vmatmul.mubr.f32.gmra.mrb[0].mxu0 %v391
    %v488 = vpop.f32.mrb[0].mxu0
    %v489 = vadd.f32 0.0, %v488
    %v490 = vpop.f32.mrb[0].mxu0
    %491 = vmatprep.mubr.f32.mxu0 0.0
    %492 = vmatmul.mubr.f32.gmra.mrb[0].mxu0 %v394
    %v493 = vpop.f32.mrb[0].mxu0
    %v494 = vadd.f32 0.0, %v493
    %v495 = vpop.f32.mrb[0].mxu0
    %496 = vmatprep.mubr.f32.mxu0 0.0
    %497 = vmatmul.mubr.f32.gmra.mrb[0].mxu0 %v397
    %v498 = vpop.f32.mrb[0].mxu0
    %v499 = vadd.f32 0.0, %v498
    %v500 = vpop.f32.mrb[0].mxu0
    %501 = vmatprep.mubr.f32.mxu0 0.0
    %502 = vmatmul.mubr.f32.gmra.mrb[0].mxu0 %v400
    %v503 = vpop.f32.mrb[0].mxu0
    %v504 = vadd.f32 0.0, %v503
    %v505 = vpop.f32.mrb[0].mxu0
    %506 = vdwg.mxu0
    %v507 = vmul.f32 %v469, %v118
    %v508 = vmul.f32 %v474, %v119
    %v509 = vmul.f32 %v479, %v120
    %v510 = vmul.f32 %v484, %v121
    %v511 = vmul.f32 %v489, %v122
    %v512 = vmul.f32 %v494, %v123
    %v513 = vmul.f32 %v499, %v124
    %v514 = vmul.f32 %v504, %v125
    %v515 = vld [vmem:[%s9] sm:$0xff]
    %v516 = vld [vmem:[%s9 + $0x8] sm:$0xff]
    %v517 = vld [vmem:[%s9 + $0x10] sm:$0xff]
    %v518 = vld [vmem:[%s9 + $0x18] sm:$0xff]
    %519 = vmatprep.subr.mxu0 0.0
    %520 = vmatpush1.msra.mxu0 %v515
    %521 = vmatprep.subr.mxu0 0.0
    %522 = vmatpush1.msra.mxu0 %v516
    %523 = vmatprep.subr.mxu0 0.0
    %524 = vmatpush1.msra.mxu0 %v517
    %525 = vmatprep.subr.mxu0 0.0
    %526 = vmatpush1.msra.mxu0 %v518
    %527 = vmatprep.subr.mxu0 0.0
    %528 = vmatpush1.msra.mxu0 0.0
    %529 = vmatprep.subr.mxu0 0.0
    %530 = vmatpush1.msra.mxu0 0.0
    %531 = vmatprep.subr.mxu0 0.0
    %532 = vmatpush1.msra.mxu0 0.0
    %533 = vmatprep.subr.mxu0 0.0
    %534 = vmatpush1.msra.mxu0 0.0
    %535 = vmatprep.subr.mxu0 0.0
    %536 = vmatpush1.msra.mxu0 0.0
    %537 = vmatprep.subr.mxu0 0.0
    %538 = vmatpush1.msra.mxu0 0.0
    %539 = vmatprep.subr.mxu0 0.0
    %540 = vmatpush1.msra.mxu0 0.0
    %541 = vmatprep.subr.mxu0 0.0
    %542 = vmatpush1.msra.mxu0 0.0
    %543 = vmatprep.subr.mxu0 0.0
    %544 = vmatpush1.msra.mxu0 0.0
    %545 = vmatprep.subr.mxu0 0.0
    %546 = vmatpush1.msra.mxu0 0.0
    %547 = vmatprep.subr.mxu0 0.0
    %548 = vmatpush1.msra.mxu0 0.0
    %549 = vmatprep.subr.mxu0 0.0
    %550 = vmatpush1.msra.mxu0 0.0
    %551 = vmatprep.subr.mxu0 0.0
    %552 = vmatpush1.msra.mxu0 0.0
    %553 = vmatprep.subr.mxu0 0.0
    %554 = vmatpush1.msra.mxu0 0.0
    %555 = vmatprep.subr.mxu0 0.0
    %556 = vmatpush1.msra.mxu0 0.0
    %557 = vmatprep.subr.mxu0 0.0
    %558 = vmatpush1.msra.mxu0 0.0
    %559 = vmatprep.subr.mxu0 0.0
    %560 = vmatpush1.msra.mxu0 0.0
    %561 = vmatprep.subr.mxu0 0.0
    %562 = vmatpush1.msra.mxu0 0.0
    %563 = vmatprep.subr.mxu0 0.0
    %564 = vmatpush1.msra.mxu0 0.0
    %565 = vmatprep.subr.mxu0 0.0
    %566 = vmatpush1.msra.mxu0 0.0
    %567 = vmatprep.subr.mxu0 0.0
    %568 = vmatpush1.msra.mxu0 0.0
    %569 = vmatprep.subr.mxu0 0.0
    %570 = vmatpush1.msra.mxu0 0.0
    %571 = vmatprep.subr.mxu0 0.0
    %572 = vmatpush1.msra.mxu0 0.0
    %573 = vmatprep.subr.mxu0 0.0
    %574 = vmatpush1.msra.mxu0 0.0
    %575 = vmatprep.subr.mxu0 0.0
    %576 = vmatpush1.msra.mxu0 0.0
    %577 = vmatprep.subr.mxu0 0.0
    %578 = vmatpush1.msra.mxu0 0.0
    %579 = vmatprep.subr.mxu0 0.0
    %580 = vmatpush1.msra.mxu0 0.0
    %581 = vmatprep.subr.mxu0 0.0
    %582 = vmatpush1.msra.mxu0 0.0
    %583 = vmatprep.mubr.f32.mxu0 0.0
    %584 = vmatmul.mubr.f32.gmra.mrb[0].mxu0 %v379
    %v585 = vpop.f32.mrb[0].mxu0
    %v586 = vadd.f32 0.0, %v585
    %v587 = vpop.f32.mrb[0].mxu0
    %588 = vmatprep.mubr.f32.mxu0 0.0
    %589 = vmatmul.mubr.f32.gmra.mrb[0].mxu0 %v382
    %v590 = vpop.f32.mrb[0].mxu0
    %v591 = vadd.f32 0.0, %v590
    %v592 = vpop.f32.mrb[0].mxu0
    %593 = vmatprep.mubr.f32.mxu0 0.0
    %594 = vmatmul.mubr.f32.gmra.mrb[0].mxu0 %v385
    %v595 = vpop.f32.mrb[0].mxu0
    %v596 = vadd.f32 0.0, %v595
    %v597 = vpop.f32.mrb[0].mxu0
    %598 = vmatprep.mubr.f32.mxu0 0.0
    %599 = vmatmul.mubr.f32.gmra.mrb[0].mxu0 %v388
    %v600 = vpop.f32.mrb[0].mxu0
    %v601 = vadd.f32 0.0, %v600
    %v602 = vpop.f32.mrb[0].mxu0
    %603 = vmatprep.mubr.f32.mxu0 0.0
    %604 = vmatmul.mubr.f32.gmra.mrb[0].mxu0 %v391
    %v605 = vpop.f32.mrb[0].mxu0
    %v606 = vadd.f32 0.0, %v605
    %v607 = vpop.f32.mrb[0].mxu0
    %608 = vmatprep.mubr.f32.mxu0 0.0
    %609 = vmatmul.mubr.f32.gmra.mrb[0].mxu0 %v394
    %v610 = vpop.f32.mrb[0].mxu0
    %v611 = vadd.f32 0.0, %v610
    %v612 = vpop.f32.mrb[0].mxu0
    %613 = vmatprep.mubr.f32.mxu0 0.0
    %614 = vmatmul.mubr.f32.gmra.mrb[0].mxu0 %v397
    %v615 = vpop.f32.mrb[0].mxu0
    %v616 = vadd.f32 0.0, %v615
    %v617 = vpop.f32.mrb[0].mxu0
    %618 = vmatprep.mubr.f32.mxu0 0.0
    %619 = vmatmul.mubr.f32.gmra.mrb[0].mxu0 %v400
    %v620 = vpop.f32.mrb[0].mxu0
    %v621 = vadd.f32 0.0, %v620
    %v622 = vpop.f32.mrb[0].mxu0
    %623 = vdwg.mxu0
    %v624 = vmul.f32 %v586, %v118
    %v625 = vmul.f32 %v591, %v119
    %v626 = vmul.f32 %v596, %v120
    %v627 = vmul.f32 %v601, %v121
    %v628 = vmul.f32 %v606, %v122
    %v629 = vmul.f32 %v611, %v123
    %v630 = vmul.f32 %v616, %v124
    %v631 = vmul.f32 %v621, %v125
    %v633 = vsel %vm137, %v236, 0
    %v636 = vsel %vm137, %v241, 0
    %v639 = vsel %vm137, %v507, 0
    %v642 = vsel %vm137, %v508, 0
    %v645 = vsel %vm137, %v509, 0
    %v648 = vsel %vm137, %v510, 0
    %v651 = vsel %vm137, %v511, 0
    %v654 = vsel %vm137, %v512, 0
    %v657 = vsel %vm137, %v513, 0
    %v660 = vsel %vm137, %v514, 0
    %662 = vmatprep.subr.mxu0 0.0
    %663 = vmatpush1.xpose.msra.mxu0 %v639
    %664 = vmatprep.subr.mxu0 0.0
    %665 = vmatpush1.xpose.msra.mxu0 %v642
    %666 = vmatprep.subr.mxu0 0.0
    %667 = vmatpush1.xpose.msra.mxu0 %v645
    %668 = vmatprep.subr.mxu0 0.0
    %669 = vmatpush1.xpose.msra.mxu0 %v648
    %670 = vmatprep.subr.mxu0 0.0
    %671 = vmatpush1.xpose.msra.mxu0 %v651
    %672 = vmatprep.subr.mxu0 0.0
    %673 = vmatpush1.xpose.msra.mxu0 %v654
    %674 = vmatprep.subr.mxu0 0.0
    %675 = vmatpush1.xpose.msra.mxu0 %v657
    %676 = vmatprep.subr.mxu0 0.0
    %677 = vmatpush1.xpose.msra.mxu0 %v660
    %678 = vmatprep.subr.mxu0 0.0
    %679 = vmatpush1.xpose.msra.mxu0 0.0
    %680 = vmatprep.subr.mxu0 0.0
    %681 = vmatpush1.xpose.msra.mxu0 0.0
    %682 = vmatprep.subr.mxu0 0.0
    %683 = vmatpush1.xpose.msra.mxu0 0.0
    %684 = vmatprep.subr.mxu0 0.0
    %685 = vmatpush1.xpose.msra.mxu0 0.0
    %686 = vmatprep.subr.mxu0 0.0
    %687 = vmatpush1.xpose.msra.mxu0 0.0
    %688 = vmatprep.subr.mxu0 0.0
    %689 = vmatpush1.xpose.msra.mxu0 0.0
    %690 = vmatprep.subr.mxu0 0.0
    %691 = vmatpush1.xpose.msra.mxu0 0.0
    %692 = vmatprep.subr.mxu0 0.0
    %693 = vmatpush1.xpose.msra.mxu0 0.0
    %694 = vmatprep.subr.mxu0 0.0
    %695 = vmatpush1.xpose.msra.mxu0 0.0
    %696 = vmatprep.subr.mxu0 0.0
    %697 = vmatpush1.xpose.msra.mxu0 0.0
    %698 = vmatprep.subr.mxu0 0.0
    %699 = vmatpush1.xpose.msra.mxu0 0.0
    %700 = vmatprep.subr.mxu0 0.0
    %701 = vmatpush1.xpose.msra.mxu0 0.0
    %702 = vmatprep.subr.mxu0 0.0
    %703 = vmatpush1.xpose.msra.mxu0 0.0
    %704 = vmatprep.subr.mxu0 0.0
    %705 = vmatpush1.xpose.msra.mxu0 0.0
    %706 = vmatprep.subr.mxu0 0.0
    %707 = vmatpush1.xpose.msra.mxu0 0.0
    %708 = vmatprep.subr.mxu0 0.0
    %709 = vmatpush1.xpose.msra.mxu0 0.0
    %710 = vmatprep.subr.mxu0 0.0
    %711 = vmatpush1.xpose.msra.mxu0 0.0
    %712 = vmatprep.subr.mxu0 0.0
    %713 = vmatpush1.xpose.msra.mxu0 0.0
    %714 = vmatprep.subr.mxu0 0.0
    %715 = vmatpush1.xpose.msra.mxu0 0.0
    %716 = vmatprep.subr.mxu0 0.0
    %717 = vmatpush1.xpose.msra.mxu0 0.0
    %718 = vmatprep.subr.mxu0 0.0
    %719 = vmatpush1.xpose.msra.mxu0 0.0
    %720 = vmatprep.subr.mxu0 0.0
    %721 = vmatpush1.xpose.msra.mxu0 0.0
    %722 = vmatprep.subr.mxu0 0.0
    %723 = vmatpush1.xpose.msra.mxu0 0.0
    %724 = vmatprep.subr.mxu0 0.0
    %725 = vmatpush1.xpose.msra.mxu0 0.0
    %726 = vmatprep.mubr.f32.mxu0 0.0
    %727 = vmatmul.mubr.f32.gmra.mrb[0].mxu0 %v633
    %v728 = vpop.f32.mrb[0].mxu0
    %v729 = vadd.f32 %v108, %v728
    %v730 = vpop.f32.mrb[0].mxu0
    %731 = vmatprep.mubr.f32.mxu0 0.0
    %732 = vmatmul.mubr.f32.gmra.mrb[0].mxu0 %v636
    %v733 = vpop.f32.mrb[0].mxu0
    %v734 = vadd.f32 %v109, %v733
    %v735 = vpop.f32.mrb[0].mxu0
    %736 = vdwg.mxu0
    %vm737 = vcmask 523264
    %v738 = vsel %vm737, %v729, -inf
    %739 = vmax.xlane.f32.xlu0 %v738
    %v740 = vpop.xlane.xlu0 %739
    %v741 = vsel %vm737, %v734, -inf
    %742 = vmax.xlane.f32.xlu0 %v741
    %v743 = vpop.xlane.xlu0 %742
    %v744 = vsub.f32 %v729, %v740
    %v745 = vsub.f32 %v734, %v743
    %v746 = vmul.f32 %v744, 1.442695
    %v747 = vpow.pop %v746
    %v748 = vmul.f32 %v745, 1.442695
    %v749 = vpow.pop %v748
    %v751 = vsel %vm737, %v747, 0
    %v754 = vsel %vm737, %v749, 0
    %756 = vmatprep.subr.mxu0 0.0
    %757 = vmatpush1.msra.mxu0 %v126
    %758 = vmatprep.subr.mxu0 0.0
    %759 = vmatpush1.msra.mxu0 %v127
    %760 = vmatprep.subr.mxu0 0.0
    %761 = vmatpush1.msra.mxu0 %v128
    %762 = vmatprep.subr.mxu0 0.0
    %763 = vmatpush1.msra.mxu0 %v129
    %764 = vmatprep.subr.mxu0 0.0
    %765 = vmatpush1.msra.mxu0 %v130
    %766 = vmatprep.subr.mxu0 0.0
    %767 = vmatpush1.msra.mxu0 %v131
    %768 = vmatprep.subr.mxu0 0.0
    %769 = vmatpush1.msra.mxu0 %v132
    %770 = vmatprep.subr.mxu0 0.0
    %771 = vmatpush1.msra.mxu0 %v133
    %772 = vmatprep.subr.mxu0 0.0
    %773 = vmatpush1.msra.mxu0 0.0
    %774 = vmatprep.subr.mxu0 0.0
    %775 = vmatpush1.msra.mxu0 0.0
    %776 = vmatprep.subr.mxu0 0.0
    %777 = vmatpush1.msra.mxu0 0.0
    %778 = vmatprep.subr.mxu0 0.0
    %779 = vmatpush1.msra.mxu0 0.0
    %780 = vmatprep.subr.mxu0 0.0
    %781 = vmatpush1.msra.mxu0 0.0
    %782 = vmatprep.subr.mxu0 0.0
    %783 = vmatpush1.msra.mxu0 0.0
    %784 = vmatprep.subr.mxu0 0.0
    %785 = vmatpush1.msra.mxu0 0.0
    %786 = vmatprep.subr.mxu0 0.0
    %787 = vmatpush1.msra.mxu0 0.0
    %788 = vmatprep.subr.mxu0 0.0
    %789 = vmatpush1.msra.mxu0 0.0
    %790 = vmatprep.subr.mxu0 0.0
    %791 = vmatpush1.msra.mxu0 0.0
    %792 = vmatprep.subr.mxu0 0.0
    %793 = vmatpush1.msra.mxu0 0.0
    %794 = vmatprep.subr.mxu0 0.0
    %795 = vmatpush1.msra.mxu0 0.0
    %796 = vmatprep.subr.mxu0 0.0
    %797 = vmatpush1.msra.mxu0 0.0
    %798 = vmatprep.subr.mxu0 0.0
    %799 = vmatpush1.msra.mxu0 0.0
    %800 = vmatprep.subr.mxu0 0.0
    %801 = vmatpush1.msra.mxu0 0.0
    %802 = vmatprep.subr.mxu0 0.0
    %803 = vmatpush1.msra.mxu0 0.0
    %804 = vmatprep.subr.mxu0 0.0
    %805 = vmatpush1.msra.mxu0 0.0
    %806 = vmatprep.subr.mxu0 0.0
    %807 = vmatpush1.msra.mxu0 0.0
    %808 = vmatprep.subr.mxu0 0.0
    %809 = vmatpush1.msra.mxu0 0.0
    %810 = vmatprep.subr.mxu0 0.0
    %811 = vmatpush1.msra.mxu0 0.0
    %812 = vmatprep.subr.mxu0 0.0
    %813 = vmatpush1.msra.mxu0 0.0
    %814 = vmatprep.subr.mxu0 0.0
    %815 = vmatpush1.msra.mxu0 0.0
    %816 = vmatprep.subr.mxu0 0.0
    %817 = vmatpush1.msra.mxu0 0.0
    %818 = vmatprep.subr.mxu0 0.0
    %819 = vmatpush1.msra.mxu0 0.0
    %820 = vmatprep.mubr.f32.mxu0 0.0
    %821 = vmatmul.mubr.f32.gmra.mrb[0].mxu0 %v751
    %v822 = vpop.f32.mrb[0].mxu0
    %v823 = vadd.f32 0.0, %v822
    %v824 = vpop.f32.mrb[0].mxu0
    %825 = vmatprep.mubr.f32.mxu0 0.0
    %826 = vmatmul.mubr.f32.gmra.mrb[0].mxu0 %v754
    %v827 = vpop.f32.mrb[0].mxu0
    %v828 = vadd.f32 0.0, %v827
    %v829 = vpop.f32.mrb[0].mxu0
    %830 = vdwg.mxu0
    %v831 = vmax.f32 %v823, 1e-30
    %v832 = vmax.f32 %v828, 1e-30
    %v833 = vrcp.pop %v831
    %v834 = vrcp.pop %v832
    %v835 = vmul.f32 %v747, %v833
    %v836 = vmul.f32 %v749, %v834
    %v838 = vsel %vm737, %v835, 0
    %v841 = vsel %vm737, %v836, 0
    %843 = vmatprep.subr.mxu0 0.0
    %844 = vmatpush1.msra.mxu0 %v624
    %845 = vmatprep.subr.mxu0 0.0
    %846 = vmatpush1.msra.mxu0 %v625
    %847 = vmatprep.subr.mxu0 0.0
    %848 = vmatpush1.msra.mxu0 %v626
    %849 = vmatprep.subr.mxu0 0.0
    %850 = vmatpush1.msra.mxu0 %v627
    %851 = vmatprep.subr.mxu0 0.0
    %852 = vmatpush1.msra.mxu0 %v628
    %853 = vmatprep.subr.mxu0 0.0
    %854 = vmatpush1.msra.mxu0 %v629
    %855 = vmatprep.subr.mxu0 0.0
    %856 = vmatpush1.msra.mxu0 %v630
    %857 = vmatprep.subr.mxu0 0.0
    %858 = vmatpush1.msra.mxu0 %v631
    %859 = vmatprep.subr.mxu0 0.0
    %860 = vmatpush1.msra.mxu0 0.0
    %861 = vmatprep.subr.mxu0 0.0
    %862 = vmatpush1.msra.mxu0 0.0
    %863 = vmatprep.subr.mxu0 0.0
    %864 = vmatpush1.msra.mxu0 0.0
    %865 = vmatprep.subr.mxu0 0.0
    %866 = vmatpush1.msra.mxu0 0.0
    %867 = vmatprep.subr.mxu0 0.0
    %868 = vmatpush1.msra.mxu0 0.0
    %869 = vmatprep.subr.mxu0 0.0
    %870 = vmatpush1.msra.mxu0 0.0
    %871 = vmatprep.subr.mxu0 0.0
    %872 = vmatpush1.msra.mxu0 0.0
    %873 = vmatprep.subr.mxu0 0.0
    %874 = vmatpush1.msra.mxu0 0.0
    %875 = vmatprep.subr.mxu0 0.0
    %876 = vmatpush1.msra.mxu0 0.0
    %877 = vmatprep.subr.mxu0 0.0
    %878 = vmatpush1.msra.mxu0 0.0
    %879 = vmatprep.subr.mxu0 0.0
    %880 = vmatpush1.msra.mxu0 0.0
    %881 = vmatprep.subr.mxu0 0.0
    %882 = vmatpush1.msra.mxu0 0.0
    %883 = vmatprep.subr.mxu0 0.0
    %884 = vmatpush1.msra.mxu0 0.0
    %885 = vmatprep.subr.mxu0 0.0
    %886 = vmatpush1.msra.mxu0 0.0
    %887 = vmatprep.subr.mxu0 0.0
    %888 = vmatpush1.msra.mxu0 0.0
    %889 = vmatprep.subr.mxu0 0.0
    %890 = vmatpush1.msra.mxu0 0.0
    %891 = vmatprep.subr.mxu0 0.0
    %892 = vmatpush1.msra.mxu0 0.0
    %893 = vmatprep.subr.mxu0 0.0
    %894 = vmatpush1.msra.mxu0 0.0
    %895 = vmatprep.subr.mxu0 0.0
    %896 = vmatpush1.msra.mxu0 0.0
    %897 = vmatprep.subr.mxu0 0.0
    %898 = vmatpush1.msra.mxu0 0.0
    %899 = vmatprep.subr.mxu0 0.0
    %900 = vmatpush1.msra.mxu0 0.0
    %901 = vmatprep.subr.mxu0 0.0
    %902 = vmatpush1.msra.mxu0 0.0
    %903 = vmatprep.subr.mxu0 0.0
    %904 = vmatpush1.msra.mxu0 0.0
    %905 = vmatprep.subr.mxu0 0.0
    %906 = vmatpush1.msra.mxu0 0.0
    %907 = vmatprep.mubr.f32.mxu0 0.0
    %908 = vmatmul.mubr.f32.gmra.mrb[0].mxu0 %v838
    %v909 = vpop.f32.mrb[0].mxu0
    %v910 = vadd.f32 0.0, %v909
    %v911 = vpop.f32.mrb[0].mxu0
    %912 = vmatprep.mubr.f32.mxu0 0.0
    %913 = vmatmul.mubr.f32.gmra.mrb[0].mxu0 %v841
    %v914 = vpop.f32.mrb[0].mxu0
    %v915 = vadd.f32 0.0, %v914
    %v916 = vpop.f32.mrb[0].mxu0
    %917 = vdwg.mxu0
    %v918 = vld [vmem:[%s10] sm:$0xff]
    %v919 = vld [vmem:[%s10 + $0x8] sm:$0xff]
    %v920 = vld [vmem:[%s10 + $0x10] sm:$0xff]
    %v921 = vld [vmem:[%s10 + $0x18] sm:$0xff]
    %v923 = vsel %vm137, %v910, 0
    %v926 = vsel %vm137, %v915, 0
    %928 = vmatprep.subr.mxu0 0.0
    %929 = vmatpush1.msra.mxu0 %v918
    %930 = vmatprep.subr.mxu0 0.0
    %931 = vmatpush1.msra.mxu0 %v919
    %932 = vmatprep.subr.mxu0 0.0
    %933 = vmatpush1.msra.mxu0 %v920
    %934 = vmatprep.subr.mxu0 0.0
    %935 = vmatpush1.msra.mxu0 %v921
    %936 = vmatprep.subr.mxu0 0.0
    %937 = vmatpush1.msra.mxu0 0.0
    %938 = vmatprep.subr.mxu0 0.0
    %939 = vmatpush1.msra.mxu0 0.0
    %940 = vmatprep.subr.mxu0 0.0
    %941 = vmatpush1.msra.mxu0 0.0
    %942 = vmatprep.subr.mxu0 0.0
    %943 = vmatpush1.msra.mxu0 0.0
    %944 = vmatprep.subr.mxu0 0.0
    %945 = vmatpush1.msra.mxu0 0.0
    %946 = vmatprep.subr.mxu0 0.0
    %947 = vmatpush1.msra.mxu0 0.0
    %948 = vmatprep.subr.mxu0 0.0
    %949 = vmatpush1.msra.mxu0 0.0
    %950 = vmatprep.subr.mxu0 0.0
    %951 = vmatpush1.msra.mxu0 0.0
    %952 = vmatprep.subr.mxu0 0.0
    %953 = vmatpush1.msra.mxu0 0.0
    %954 = vmatprep.subr.mxu0 0.0
    %955 = vmatpush1.msra.mxu0 0.0
    %956 = vmatprep.subr.mxu0 0.0
    %957 = vmatpush1.msra.mxu0 0.0
    %958 = vmatprep.subr.mxu0 0.0
    %959 = vmatpush1.msra.mxu0 0.0
    %960 = vmatprep.subr.mxu0 0.0
    %961 = vmatpush1.msra.mxu0 0.0
    %962 = vmatprep.subr.mxu0 0.0
    %963 = vmatpush1.msra.mxu0 0.0
    %964 = vmatprep.subr.mxu0 0.0
    %965 = vmatpush1.msra.mxu0 0.0
    %966 = vmatprep.subr.mxu0 0.0
    %967 = vmatpush1.msra.mxu0 0.0
    %968 = vmatprep.subr.mxu0 0.0
    %969 = vmatpush1.msra.mxu0 0.0
    %970 = vmatprep.subr.mxu0 0.0
    %971 = vmatpush1.msra.mxu0 0.0
    %972 = vmatprep.subr.mxu0 0.0
    %973 = vmatpush1.msra.mxu0 0.0
    %974 = vmatprep.subr.mxu0 0.0
    %975 = vmatpush1.msra.mxu0 0.0
    %976 = vmatprep.subr.mxu0 0.0
    %977 = vmatpush1.msra.mxu0 0.0
    %978 = vmatprep.subr.mxu0 0.0
    %979 = vmatpush1.msra.mxu0 0.0
    %980 = vmatprep.subr.mxu0 0.0
    %981 = vmatpush1.msra.mxu0 0.0
    %982 = vmatprep.subr.mxu0 0.0
    %983 = vmatpush1.msra.mxu0 0.0
    %984 = vmatprep.subr.mxu0 0.0
    %985 = vmatpush1.msra.mxu0 0.0
    %986 = vmatprep.subr.mxu0 0.0
    %987 = vmatpush1.msra.mxu0 0.0
    %988 = vmatprep.subr.mxu0 0.0
    %989 = vmatpush1.msra.mxu0 0.0
    %990 = vmatprep.subr.mxu0 0.0
    %991 = vmatpush1.msra.mxu0 0.0
    %992 = vmatprep.mubr.f32.mxu0 0.0
    %993 = vmatmul.mubr.f32.gmra.mrb[0].mxu0 %v923
    %v994 = vpop.f32.mrb[0].mxu0
    %v995 = vadd.f32 0.0, %v994
    %v996 = vpop.f32.mrb[0].mxu0
    %997 = vmatprep.mubr.f32.mxu0 0.0
    %998 = vmatmul.mubr.f32.gmra.mrb[0].mxu0 %v926
    %v999 = vpop.f32.mrb[0].mxu0
    %v1000 = vadd.f32 0.0, %v999
    %v1001 = vpop.f32.mrb[0].mxu0
    %1002 = vdwg.mxu0
    %v1003 = vadd.f32 %v106, %v995
    %v1004 = vadd.f32 %v107, %v1000
    %v1005 = vld [vmem:[%s11] sm:$0x1]
    %v1006 = vmul.f32 %v1003, %v1003
    %v1007 = vmul.f32 %v1004, %v1004
    %v1008 = vsel %vm137, %v1006, 0.0
    %1009 = vadd.xlane.f32.xlu0 %v1008
    %v1010 = vpop.xlane.xlu0 %1009
    %v1011 = vsel %vm137, %v1007, 0.0
    %1012 = vadd.xlane.f32.xlu0 %v1011
    %v1013 = vpop.xlane.xlu0 %1012
    %v1014 = vmul.f32 %v1010, %v144
    %v1015 = vmul.f32 %v1013, %v144
    %v1016 = vadd.f32 %v1014, 1e-06
    %v1017 = vadd.f32 %v1015, 1e-06
    %v1018 = vrsqrt.pop %v1016
    %v1019 = vrsqrt.pop %v1017
    %v1020 = vmul.f32 %v1003, %v1018
    %v1021 = vmul.f32 %v1004, %v1019
    %v1022 = vlaneseq
    %v1023 = vshrl.u32 %v1022, 7
    %v1024 = vsub.s32 0, %v1023
    %v1025 = vrot.slane %v1005, %v1024
    %v1026 = vmul.f32 %v1020, %v1025
    %v1027 = vmul.f32 %v1021, %v1025
    %v1028 = vld [vmem:[#allocation8] sm:$0xff]
    %v1029 = vld [vmem:[#allocation8 + $0x8] sm:$0xff]
    %v1030 = vld [vmem:[#allocation8 + $0x10] sm:$0xff]
    %v1031 = vld [vmem:[#allocation8 + $0x18] sm:$0xff]
    %v1033 = vsel %vm137, %v1026, 0
    %v1036 = vsel %vm137, %v1027, 0
    %1038 = vmatprep.subr.mxu0 0.0
    %1039 = vmatpush1.msra.mxu0 %v1028
    %1040 = vmatprep.subr.mxu0 0.0
    %1041 = vmatpush1.msra.mxu0 %v1029
    %1042 = vmatprep.subr.mxu0 0.0
    %1043 = vmatpush1.msra.mxu0 %v1030
    %1044 = vmatprep.subr.mxu0 0.0
    %1045 = vmatpush1.msra.mxu0 %v1031
    %1046 = vmatprep.subr.mxu0 0.0
    %1047 = vmatpush1.msra.mxu0 0.0
    %1048 = vmatprep.subr.mxu0 0.0
    %1049 = vmatpush1.msra.mxu0 0.0
    %1050 = vmatprep.subr.mxu0 0.0
    %1051 = vmatpush1.msra.mxu0 0.0
    %1052 = vmatprep.subr.mxu0 0.0
    %1053 = vmatpush1.msra.mxu0 0.0
    %1054 = vmatprep.subr.mxu0 0.0
    %1055 = vmatpush1.msra.mxu0 0.0
    %1056 = vmatprep.subr.mxu0 0.0
    %1057 = vmatpush1.msra.mxu0 0.0
    %1058 = vmatprep.subr.mxu0 0.0
    %1059 = vmatpush1.msra.mxu0 0.0
    %1060 = vmatprep.subr.mxu0 0.0
    %1061 = vmatpush1.msra.mxu0 0.0
    %1062 = vmatprep.subr.mxu0 0.0
    %1063 = vmatpush1.msra.mxu0 0.0
    %1064 = vmatprep.subr.mxu0 0.0
    %1065 = vmatpush1.msra.mxu0 0.0
    %1066 = vmatprep.subr.mxu0 0.0
    %1067 = vmatpush1.msra.mxu0 0.0
    %1068 = vmatprep.subr.mxu0 0.0
    %1069 = vmatpush1.msra.mxu0 0.0
    %1070 = vmatprep.subr.mxu0 0.0
    %1071 = vmatpush1.msra.mxu0 0.0
    %1072 = vmatprep.subr.mxu0 0.0
    %1073 = vmatpush1.msra.mxu0 0.0
    %1074 = vmatprep.subr.mxu0 0.0
    %1075 = vmatpush1.msra.mxu0 0.0
    %1076 = vmatprep.subr.mxu0 0.0
    %1077 = vmatpush1.msra.mxu0 0.0
    %1078 = vmatprep.subr.mxu0 0.0
    %1079 = vmatpush1.msra.mxu0 0.0
    %1080 = vmatprep.subr.mxu0 0.0
    %1081 = vmatpush1.msra.mxu0 0.0
    %1082 = vmatprep.subr.mxu0 0.0
    %1083 = vmatpush1.msra.mxu0 0.0
    %1084 = vmatprep.subr.mxu0 0.0
    %1085 = vmatpush1.msra.mxu0 0.0
    %1086 = vmatprep.subr.mxu0 0.0
    %1087 = vmatpush1.msra.mxu0 0.0
    %1088 = vmatprep.subr.mxu0 0.0
    %1089 = vmatpush1.msra.mxu0 0.0
    %1090 = vmatprep.subr.mxu0 0.0
    %1091 = vmatpush1.msra.mxu0 0.0
    %1092 = vmatprep.subr.mxu0 0.0
    %1093 = vmatpush1.msra.mxu0 0.0
    %1094 = vmatprep.subr.mxu0 0.0
    %1095 = vmatpush1.msra.mxu0 0.0
    %1096 = vmatprep.subr.mxu0 0.0
    %1097 = vmatpush1.msra.mxu0 0.0
    %1098 = vmatprep.subr.mxu0 0.0
    %1099 = vmatpush1.msra.mxu0 0.0
    %1100 = vmatprep.subr.mxu0 0.0
    %1101 = vmatpush1.msra.mxu0 0.0
    %1102 = vmatprep.mubr.f32.mxu0 0.0
    %1103 = vmatmul.mubr.f32.gmra.mrb[0].mxu0 %v1033
    %v1104 = vpop.f32.mrb[0].mxu0
    %v1105 = vadd.f32 0.0, %v1104
    %v1106 = vpop.f32.mrb[0].mxu0
    %1107 = vmatprep.mubr.f32.mxu0 0.0
    %1108 = vmatmul.mubr.f32.gmra.mrb[0].mxu0 %v1036
    %v1109 = vpop.f32.mrb[0].mxu0
    %v1110 = vadd.f32 0.0, %v1109
    %v1111 = vpop.f32.mrb[0].mxu0
    %1112 = vdwg.mxu0
    %v1113 = vmax.f32 %v1105, 0.0
    %v1114 = vmax.f32 %v1110, 0.0
    %v1115 = vld [vmem:[%s13] sm:$0xff]
    %v1116 = vld [vmem:[%s13 + $0x8] sm:$0xff]
    %v1117 = vld [vmem:[%s13 + $0x10] sm:$0xff]
    %v1118 = vld [vmem:[%s13 + $0x18] sm:$0xff]
    %v1119 = vld [vmem:[%s13 + $0x20] sm:$0xff]
    %v1120 = vld [vmem:[%s13 + $0x28] sm:$0xff]
    %v1121 = vld [vmem:[%s13 + $0x30] sm:$0xff]
    %v1122 = vld [vmem:[%s13 + $0x38] sm:$0xff]
    %v1124 = vsel %vm737, %v1113, 0
    %v1127 = vsel %vm737, %v1114, 0
    %1129 = vmatprep.subr.mxu0 0.0
    %1130 = vmatpush1.msra.mxu0 %v1115
    %1131 = vmatprep.subr.mxu0 0.0
    %1132 = vmatpush1.msra.mxu0 %v1116
    %1133 = vmatprep.subr.mxu0 0.0
    %1134 = vmatpush1.msra.mxu0 %v1117
    %1135 = vmatprep.subr.mxu0 0.0
    %1136 = vmatpush1.msra.mxu0 %v1118
    %1137 = vmatprep.subr.mxu0 0.0
    %1138 = vmatpush1.msra.mxu0 %v1119
    %1139 = vmatprep.subr.mxu0 0.0
    %1140 = vmatpush1.msra.mxu0 %v1120
    %1141 = vmatprep.subr.mxu0 0.0
    %1142 = vmatpush1.msra.mxu0 %v1121
    %1143 = vmatprep.subr.mxu0 0.0
    %1144 = vmatpush1.msra.mxu0 %v1122
    %1145 = vmatprep.subr.mxu0 0.0
    %1146 = vmatpush1.msra.mxu0 0.0
    %1147 = vmatprep.subr.mxu0 0.0
    %1148 = vmatpush1.msra.mxu0 0.0
    %1149 = vmatprep.subr.mxu0 0.0
    %1150 = vmatpush1.msra.mxu0 0.0
    %1151 = vmatprep.subr.mxu0 0.0
    %1152 = vmatpush1.msra.mxu0 0.0
    %1153 = vmatprep.subr.mxu0 0.0
    %1154 = vmatpush1.msra.mxu0 0.0
    %1155 = vmatprep.subr.mxu0 0.0
    %1156 = vmatpush1.msra.mxu0 0.0
    %1157 = vmatprep.subr.mxu0 0.0
    %1158 = vmatpush1.msra.mxu0 0.0
    %1159 = vmatprep.subr.mxu0 0.0
    %1160 = vmatpush1.msra.mxu0 0.0
    %1161 = vmatprep.subr.mxu0 0.0
    %1162 = vmatpush1.msra.mxu0 0.0
    %1163 = vmatprep.subr.mxu0 0.0
    %1164 = vmatpush1.msra.mxu0 0.0
    %1165 = vmatprep.subr.mxu0 0.0
    %1166 = vmatpush1.msra.mxu0 0.0
    %1167 = vmatprep.subr.mxu0 0.0
    %1168 = vmatpush1.msra.mxu0 0.0
    %1169 = vmatprep.subr.mxu0 0.0
    %1170 = vmatpush1.msra.mxu0 0.0
    %1171 = vmatprep.subr.mxu0 0.0
    %1172 = vmatpush1.msra.mxu0 0.0
    %1173 = vmatprep.subr.mxu0 0.0
    %1174 = vmatpush1.msra.mxu0 0.0
    %1175 = vmatprep.subr.mxu0 0.0
    %1176 = vmatpush1.msra.mxu0 0.0
    %1177 = vmatprep.subr.mxu0 0.0
    %1178 = vmatpush1.msra.mxu0 0.0
    %1179 = vmatprep.subr.mxu0 0.0
    %1180 = vmatpush1.msra.mxu0 0.0
    %1181 = vmatprep.subr.mxu0 0.0
    %1182 = vmatpush1.msra.mxu0 0.0
    %1183 = vmatprep.subr.mxu0 0.0
    %1184 = vmatpush1.msra.mxu0 0.0
    %1185 = vmatprep.subr.mxu0 0.0
    %1186 = vmatpush1.msra.mxu0 0.0
    %1187 = vmatprep.subr.mxu0 0.0
    %1188 = vmatpush1.msra.mxu0 0.0
    %1189 = vmatprep.subr.mxu0 0.0
    %1190 = vmatpush1.msra.mxu0 0.0
    %1191 = vmatprep.subr.mxu0 0.0
    %1192 = vmatpush1.msra.mxu0 0.0
    %1193 = vmatprep.mubr.f32.mxu0 0.0
    %1194 = vmatmul.mubr.f32.gmra.mrb[0].mxu0 %v1124
    %v1195 = vpop.f32.mrb[0].mxu0
    %v1196 = vadd.f32 0.0, %v1195
    %v1197 = vpop.f32.mrb[0].mxu0
    %1198 = vmatprep.mubr.f32.mxu0 0.0
    %1199 = vmatmul.mubr.f32.gmra.mrb[0].mxu0 %v1127
    %v1200 = vpop.f32.mrb[0].mxu0
    %v1201 = vadd.f32 0.0, %v1200
    %v1202 = vpop.f32.mrb[0].mxu0
    %1203 = vdwg.mxu0
    %v1204 = vadd.f32 %v1003, %v1196
    %v1205 = vadd.f32 %v1004, %v1201
    %v1206 = vld [vmem:[%s6 + $0x1] sm:$0x1]
    %v1207 = vmul.f32 %v1204, %v1204
    %v1208 = vmul.f32 %v1205, %v1205
    %v1209 = vsel %vm137, %v1207, 0.0
    %1210 = vadd.xlane.f32.xlu0 %v1209
    %v1211 = vpop.xlane.xlu0 %1210
    %v1212 = vsel %vm137, %v1208, 0.0
    %1213 = vadd.xlane.f32.xlu0 %v1212
    %v1214 = vpop.xlane.xlu0 %1213
    %v1215 = vmul.f32 %v1211, %v144
    %v1216 = vmul.f32 %v1214, %v144
    %v1217 = vadd.f32 %v1215, 1e-06
    %v1218 = vadd.f32 %v1216, 1e-06
    %v1219 = vrsqrt.pop %v1217
    %v1220 = vrsqrt.pop %v1218
    %v1221 = vmul.f32 %v1204, %v1219
    %v1222 = vmul.f32 %v1205, %v1220
    %v1223 = vlaneseq
    %v1224 = vshrl.u32 %v1223, 7
    %v1225 = vsub.s32 0, %v1224
    %v1226 = vrot.slane %v1206, %v1225
    %v1227 = vmul.f32 %v1221, %v1226
    %v1228 = vmul.f32 %v1222, %v1226
    %s1229 = scalar_lea.vmem %s7, 32
    %v1230 = vld [vmem:[%s1229] sm:$0xff]
    %v1231 = vld [vmem:[%s1229 + $0x8] sm:$0xff]
    %v1232 = vld [vmem:[%s1229 + $0x10] sm:$0xff]
    %v1233 = vld [vmem:[%s1229 + $0x18] sm:$0xff]
    %v1235 = vsel %vm137, %v1227, 0
    %v1238 = vsel %vm137, %v1228, 0
    %1240 = vmatprep.subr.mxu0 0.0
    %1241 = vmatpush1.msra.mxu0 %v1230
    %1242 = vmatprep.subr.mxu0 0.0
    %1243 = vmatpush1.msra.mxu0 %v1231
    %1244 = vmatprep.subr.mxu0 0.0
    %1245 = vmatpush1.msra.mxu0 %v1232
    %1246 = vmatprep.subr.mxu0 0.0
    %1247 = vmatpush1.msra.mxu0 %v1233
    %1248 = vmatprep.subr.mxu0 0.0
    %1249 = vmatpush1.msra.mxu0 0.0
    %1250 = vmatprep.subr.mxu0 0.0
    %1251 = vmatpush1.msra.mxu0 0.0
    %1252 = vmatprep.subr.mxu0 0.0
    %1253 = vmatpush1.msra.mxu0 0.0
    %1254 = vmatprep.subr.mxu0 0.0
    %1255 = vmatpush1.msra.mxu0 0.0
    %1256 = vmatprep.subr.mxu0 0.0
    %1257 = vmatpush1.msra.mxu0 0.0
    %1258 = vmatprep.subr.mxu0 0.0
    %1259 = vmatpush1.msra.mxu0 0.0
    %1260 = vmatprep.subr.mxu0 0.0
    %1261 = vmatpush1.msra.mxu0 0.0
    %1262 = vmatprep.subr.mxu0 0.0
    %1263 = vmatpush1.msra.mxu0 0.0
    %1264 = vmatprep.subr.mxu0 0.0
    %1265 = vmatpush1.msra.mxu0 0.0
    %1266 = vmatprep.subr.mxu0 0.0
    %1267 = vmatpush1.msra.mxu0 0.0
    %1268 = vmatprep.subr.mxu0 0.0
    %1269 = vmatpush1.msra.mxu0 0.0
    %1270 = vmatprep.subr.mxu0 0.0
    %1271 = vmatpush1.msra.mxu0 0.0
    %1272 = vmatprep.subr.mxu0 0.0
    %1273 = vmatpush1.msra.mxu0 0.0
    %1274 = vmatprep.subr.mxu0 0.0
    %1275 = vmatpush1.msra.mxu0 0.0
    %1276 = vmatprep.subr.mxu0 0.0
    %1277 = vmatpush1.msra.mxu0 0.0
    %1278 = vmatprep.subr.mxu0 0.0
    %1279 = vmatpush1.msra.mxu0 0.0
    %1280 = vmatprep.subr.mxu0 0.0
    %1281 = vmatpush1.msra.mxu0 0.0
    %1282 = vmatprep.subr.mxu0 0.0
    %1283 = vmatpush1.msra.mxu0 0.0
    %1284 = vmatprep.subr.mxu0 0.0
    %1285 = vmatpush1.msra.mxu0 0.0
    %1286 = vmatprep.subr.mxu0 0.0
    %1287 = vmatpush1.msra.mxu0 0.0
    %1288 = vmatprep.subr.mxu0 0.0
    %1289 = vmatpush1.msra.mxu0 0.0
    %1290 = vmatprep.subr.mxu0 0.0
    %1291 = vmatpush1.msra.mxu0 0.0
    %1292 = vmatprep.subr.mxu0 0.0
    %1293 = vmatpush1.msra.mxu0 0.0
    %1294 = vmatprep.subr.mxu0 0.0
    %1295 = vmatpush1.msra.mxu0 0.0
    %1296 = vmatprep.subr.mxu0 0.0
    %1297 = vmatpush1.msra.mxu0 0.0
    %1298 = vmatprep.subr.mxu0 0.0
    %1299 = vmatpush1.msra.mxu0 0.0
    %1300 = vmatprep.subr.mxu0 0.0
    %1301 = vmatpush1.msra.mxu0 0.0
    %1302 = vmatprep.subr.mxu0 0.0
    %1303 = vmatpush1.msra.mxu0 0.0
    %1304 = vmatprep.mubr.f32.mxu0 0.0
    %1305 = vmatmul.mubr.f32.gmra.mrb[0].mxu0 %v1235
    %v1306 = vpop.f32.mrb[0].mxu0
    %v1307 = vadd.f32 0.0, %v1306
    %v1308 = vpop.f32.mrb[0].mxu0
    %1309 = vmatprep.mubr.f32.mxu0 0.0
    %1310 = vmatmul.mubr.f32.gmra.mrb[0].mxu0 %v1238
    %v1311 = vpop.f32.mrb[0].mxu0
    %v1312 = vadd.f32 0.0, %v1311
    %v1313 = vpop.f32.mrb[0].mxu0
    %1314 = vdwg.mxu0
    %1315 = vmatprep.subr.mxu0 0.0
    %1316 = vmatpush1.msra.mxu0 %v1227
    %1317 = vmatprep.subr.mxu0 0.0
    %1318 = vmatpush1.msra.mxu0 %v1228
    %1319 = vmatprep.subr.mxu0 0.0
    %1320 = vmatpush1.msra.mxu0 0.0
    %1321 = vmatprep.subr.mxu0 0.0
    %1322 = vmatpush1.msra.mxu0 0.0
    %1323 = vmatprep.subr.mxu0 0.0
    %1324 = vmatpush1.msra.mxu0 0.0
    %1325 = vmatprep.subr.mxu0 0.0
    %1326 = vmatpush1.msra.mxu0 0.0
    %1327 = vmatprep.subr.mxu0 0.0
    %1328 = vmatpush1.msra.mxu0 0.0
    %1329 = vmatprep.subr.mxu0 0.0
    %1330 = vmatpush1.msra.mxu0 0.0
    %1331 = vmatprep.subr.mxu0 0.0
    %1332 = vmatpush1.msra.mxu0 0.0
    %1333 = vmatprep.subr.mxu0 0.0
    %1334 = vmatpush1.msra.mxu0 0.0
    %1335 = vmatprep.subr.mxu0 0.0
    %1336 = vmatpush1.msra.mxu0 0.0
    %1337 = vmatprep.subr.mxu0 0.0
    %1338 = vmatpush1.msra.mxu0 0.0
    %1339 = vmatprep.subr.mxu0 0.0
    %1340 = vmatpush1.msra.mxu0 0.0
    %1341 = vmatprep.subr.mxu0 0.0
    %1342 = vmatpush1.msra.mxu0 0.0
    %1343 = vmatprep.subr.mxu0 0.0
    %1344 = vmatpush1.msra.mxu0 0.0
    %1345 = vmatprep.subr.mxu0 0.0
    %1346 = vmatpush1.msra.mxu0 0.0
    %1347 = vmatprep.subr.mxu0 0.0
    %1348 = vmatpush1.msra.mxu0 0.0
    %1349 = vmatprep.subr.mxu0 0.0
    %1350 = vmatpush1.msra.mxu0 0.0
    %1351 = vmatprep.subr.mxu0 0.0
    %1352 = vmatpush1.msra.mxu0 0.0
    %1353 = vmatprep.subr.mxu0 0.0
    %1354 = vmatpush1.msra.mxu0 0.0
    %1355 = vmatprep.subr.mxu0 0.0
    %1356 = vmatpush1.msra.mxu0 0.0
    %1357 = vmatprep.subr.mxu0 0.0
    %1358 = vmatpush1.msra.mxu0 0.0
    %1359 = vmatprep.subr.mxu0 0.0
    %1360 = vmatpush1.msra.mxu0 0.0
    %1361 = vmatprep.subr.mxu0 0.0
    %1362 = vmatpush1.msra.mxu0 0.0
    %1363 = vmatprep.subr.mxu0 0.0
    %1364 = vmatpush1.msra.mxu0 0.0
    %1365 = vmatprep.subr.mxu0 0.0
    %1366 = vmatpush1.msra.mxu0 0.0
    %1367 = vmatprep.subr.mxu0 0.0
    %1368 = vmatpush1.msra.mxu0 0.0
    %1369 = vmatprep.subr.mxu0 0.0
    %1370 = vmatpush1.msra.mxu0 0.0
    %1371 = vmatprep.subr.mxu0 0.0
    %1372 = vmatpush1.msra.mxu0 0.0
    %1373 = vmatprep.subr.mxu0 0.0
    %1374 = vmatpush1.msra.mxu0 0.0
    %1375 = vmatprep.subr.mxu0 0.0
    %1376 = vmatpush1.msra.mxu0 0.0
    %1377 = vmatprep.subr.mxu0 0.0
    %1378 = vmatpush1.msra.mxu0 0.0
    %1379 = vmatprep.mubr.f32.mxu0 0.0
    %1380 = vmatmul.mubr.f32.gmra.mrb[0].mxu0 %v246
    %v1381 = vpop.f32.mrb[0].mxu0
    %v1382 = vadd.f32 0.0, %v1381
    %v1383 = vpop.f32.mrb[0].mxu0
    %1384 = vmatprep.mubr.f32.mxu0 0.0
    %1385 = vmatmul.mubr.f32.gmra.mrb[0].mxu0 %v249
    %v1386 = vpop.f32.mrb[0].mxu0
    %v1387 = vadd.f32 0.0, %v1386
    %v1388 = vpop.f32.mrb[0].mxu0
    %1389 = vmatprep.mubr.f32.mxu0 0.0
    %1390 = vmatmul.mubr.f32.gmra.mrb[0].mxu0 %v252
    %v1391 = vpop.f32.mrb[0].mxu0
    %v1392 = vadd.f32 0.0, %v1391
    %v1393 = vpop.f32.mrb[0].mxu0
    %1394 = vmatprep.mubr.f32.mxu0 0.0
    %1395 = vmatmul.mubr.f32.gmra.mrb[0].mxu0 %v255
    %v1396 = vpop.f32.mrb[0].mxu0
    %v1397 = vadd.f32 0.0, %v1396
    %v1398 = vpop.f32.mrb[0].mxu0
    %1399 = vmatprep.mubr.f32.mxu0 0.0
    %1400 = vmatmul.mubr.f32.gmra.mrb[0].mxu0 %v258
    %v1401 = vpop.f32.mrb[0].mxu0
    %v1402 = vadd.f32 0.0, %v1401
    %v1403 = vpop.f32.mrb[0].mxu0
    %1404 = vmatprep.mubr.f32.mxu0 0.0
    %1405 = vmatmul.mubr.f32.gmra.mrb[0].mxu0 %v261
    %v1406 = vpop.f32.mrb[0].mxu0
    %v1407 = vadd.f32 0.0, %v1406
    %v1408 = vpop.f32.mrb[0].mxu0
    %1409 = vmatprep.mubr.f32.mxu0 0.0
    %1410 = vmatmul.mubr.f32.gmra.mrb[0].mxu0 %v264
    %v1411 = vpop.f32.mrb[0].mxu0
    %v1412 = vadd.f32 0.0, %v1411
    %v1413 = vpop.f32.mrb[0].mxu0
    %1414 = vmatprep.mubr.f32.mxu0 0.0
    %1415 = vmatmul.mubr.f32.gmra.mrb[0].mxu0 %v267
    %v1416 = vpop.f32.mrb[0].mxu0
    %v1417 = vadd.f32 0.0, %v1416
    %v1418 = vpop.f32.mrb[0].mxu0
    %1419 = vdwg.mxu0
    %s1420 = scalar_lea.vmem %s8, 32
    %v1421 = vld [vmem:[%s1420] sm:$0xff]
    %v1422 = vld [vmem:[%s1420 + $0x8] sm:$0xff]
    %v1423 = vld [vmem:[%s1420 + $0x10] sm:$0xff]
    %v1424 = vld [vmem:[%s1420 + $0x18] sm:$0xff]
    %v1426 = vsel %vm137, %v1382, 0
    %v1429 = vsel %vm137, %v1387, 0
    %v1432 = vsel %vm137, %v1392, 0
    %v1435 = vsel %vm137, %v1397, 0
    %v1438 = vsel %vm137, %v1402, 0
    %v1441 = vsel %vm137, %v1407, 0
    %v1444 = vsel %vm137, %v1412, 0
    %v1447 = vsel %vm137, %v1417, 0
    %1449 = vmatprep.subr.mxu0 0.0
    %1450 = vmatpush1.msra.mxu0 %v1421
    %1451 = vmatprep.subr.mxu0 0.0
    %1452 = vmatpush1.msra.mxu0 %v1422
    %1453 = vmatprep.subr.mxu0 0.0
    %1454 = vmatpush1.msra.mxu0 %v1423
    %1455 = vmatprep.subr.mxu0 0.0
    %1456 = vmatpush1.msra.mxu0 %v1424
    %1457 = vmatprep.subr.mxu0 0.0
    %1458 = vmatpush1.msra.mxu0 0.0
    %1459 = vmatprep.subr.mxu0 0.0
    %1460 = vmatpush1.msra.mxu0 0.0
    %1461 = vmatprep.subr.mxu0 0.0
    %1462 = vmatpush1.msra.mxu0 0.0
    %1463 = vmatprep.subr.mxu0 0.0
    %1464 = vmatpush1.msra.mxu0 0.0
    %1465 = vmatprep.subr.mxu0 0.0
    %1466 = vmatpush1.msra.mxu0 0.0
    %1467 = vmatprep.subr.mxu0 0.0
    %1468 = vmatpush1.msra.mxu0 0.0
    %1469 = vmatprep.subr.mxu0 0.0
    %1470 = vmatpush1.msra.mxu0 0.0
    %1471 = vmatprep.subr.mxu0 0.0
    %1472 = vmatpush1.msra.mxu0 0.0
    %1473 = vmatprep.subr.mxu0 0.0
    %1474 = vmatpush1.msra.mxu0 0.0
    %1475 = vmatprep.subr.mxu0 0.0
    %1476 = vmatpush1.msra.mxu0 0.0
    %1477 = vmatprep.subr.mxu0 0.0
    %1478 = vmatpush1.msra.mxu0 0.0
    %1479 = vmatprep.subr.mxu0 0.0
    %1480 = vmatpush1.msra.mxu0 0.0
    %1481 = vmatprep.subr.mxu0 0.0
    %1482 = vmatpush1.msra.mxu0 0.0
    %1483 = vmatprep.subr.mxu0 0.0
    %1484 = vmatpush1.msra.mxu0 0.0
    %1485 = vmatprep.subr.mxu0 0.0
    %1486 = vmatpush1.msra.mxu0 0.0
    %1487 = vmatprep.subr.mxu0 0.0
    %1488 = vmatpush1.msra.mxu0 0.0
    %1489 = vmatprep.subr.mxu0 0.0
    %1490 = vmatpush1.msra.mxu0 0.0
    %1491 = vmatprep.subr.mxu0 0.0
    %1492 = vmatpush1.msra.mxu0 0.0
    %1493 = vmatprep.subr.mxu0 0.0
    %1494 = vmatpush1.msra.mxu0 0.0
    %1495 = vmatprep.subr.mxu0 0.0
    %1496 = vmatpush1.msra.mxu0 0.0
    %1497 = vmatprep.subr.mxu0 0.0
    %1498 = vmatpush1.msra.mxu0 0.0
    %1499 = vmatprep.subr.mxu0 0.0
    %1500 = vmatpush1.msra.mxu0 0.0
    %1501 = vmatprep.subr.mxu0 0.0
    %1502 = vmatpush1.msra.mxu0 0.0
    %1503 = vmatprep.subr.mxu0 0.0
    %1504 = vmatpush1.msra.mxu0 0.0
    %1505 = vmatprep.subr.mxu0 0.0
    %1506 = vmatpush1.msra.mxu0 0.0
    %1507 = vmatprep.subr.mxu0 0.0
    %1508 = vmatpush1.msra.mxu0 0.0
    %1509 = vmatprep.subr.mxu0 0.0
    %1510 = vmatpush1.msra.mxu0 0.0
    %1511 = vmatprep.subr.mxu0 0.0
    %1512 = vmatpush1.msra.mxu0 0.0
    %1513 = vmatprep.mubr.f32.mxu0 0.0
    %1514 = vmatmul.mubr.f32.gmra.mrb[0].mxu0 %v1426
    %v1515 = vpop.f32.mrb[0].mxu0
    %v1516 = vadd.f32 0.0, %v1515
    %v1517 = vpop.f32.mrb[0].mxu0
    %1518 = vmatprep.mubr.f32.mxu0 0.0
    %1519 = vmatmul.mubr.f32.gmra.mrb[0].mxu0 %v1429
    %v1520 = vpop.f32.mrb[0].mxu0
    %v1521 = vadd.f32 0.0, %v1520
    %v1522 = vpop.f32.mrb[0].mxu0
    %1523 = vmatprep.mubr.f32.mxu0 0.0
    %1524 = vmatmul.mubr.f32.gmra.mrb[0].mxu0 %v1432
    %v1525 = vpop.f32.mrb[0].mxu0
    %v1526 = vadd.f32 0.0, %v1525
    %v1527 = vpop.f32.mrb[0].mxu0
    %1528 = vmatprep.mubr.f32.mxu0 0.0
    %1529 = vmatmul.mubr.f32.gmra.mrb[0].mxu0 %v1435
    %v1530 = vpop.f32.mrb[0].mxu0
    %v1531 = vadd.f32 0.0, %v1530
    %v1532 = vpop.f32.mrb[0].mxu0
    %1533 = vmatprep.mubr.f32.mxu0 0.0
    %1534 = vmatmul.mubr.f32.gmra.mrb[0].mxu0 %v1438
    %v1535 = vpop.f32.mrb[0].mxu0
    %v1536 = vadd.f32 0.0, %v1535
    %v1537 = vpop.f32.mrb[0].mxu0
    %1538 = vmatprep.mubr.f32.mxu0 0.0
    %1539 = vmatmul.mubr.f32.gmra.mrb[0].mxu0 %v1441
    %v1540 = vpop.f32.mrb[0].mxu0
    %v1541 = vadd.f32 0.0, %v1540
    %v1542 = vpop.f32.mrb[0].mxu0
    %1543 = vmatprep.mubr.f32.mxu0 0.0
    %1544 = vmatmul.mubr.f32.gmra.mrb[0].mxu0 %v1444
    %v1545 = vpop.f32.mrb[0].mxu0
    %v1546 = vadd.f32 0.0, %v1545
    %v1547 = vpop.f32.mrb[0].mxu0
    %1548 = vmatprep.mubr.f32.mxu0 0.0
    %1549 = vmatmul.mubr.f32.gmra.mrb[0].mxu0 %v1447
    %v1550 = vpop.f32.mrb[0].mxu0
    %v1551 = vadd.f32 0.0, %v1550
    %v1552 = vpop.f32.mrb[0].mxu0
    %1553 = vdwg.mxu0
    %v1554 = vmul.f32 %v1516, %v118
    %v1555 = vmul.f32 %v1521, %v119
    %v1556 = vmul.f32 %v1526, %v120
    %v1557 = vmul.f32 %v1531, %v121
    %v1558 = vmul.f32 %v1536, %v122
    %v1559 = vmul.f32 %v1541, %v123
    %v1560 = vmul.f32 %v1546, %v124
    %v1561 = vmul.f32 %v1551, %v125
    %s1562 = scalar_lea.vmem %s9, 32
    %v1563 = vld [vmem:[%s1562] sm:$0xff]
    %v1564 = vld [vmem:[%s1562 + $0x8] sm:$0xff]
    %v1565 = vld [vmem:[%s1562 + $0x10] sm:$0xff]
    %v1566 = vld [vmem:[%s1562 + $0x18] sm:$0xff]
    %1567 = vmatprep.subr.mxu0 0.0
    %1568 = vmatpush1.msra.mxu0 %v1563
    %1569 = vmatprep.subr.mxu0 0.0
    %1570 = vmatpush1.msra.mxu0 %v1564
    %1571 = vmatprep.subr.mxu0 0.0
    %1572 = vmatpush1.msra.mxu0 %v1565
    %1573 = vmatprep.subr.mxu0 0.0
    %1574 = vmatpush1.msra.mxu0 %v1566
    %1575 = vmatprep.subr.mxu0 0.0
    %1576 = vmatpush1.msra.mxu0 0.0
    %1577 = vmatprep.subr.mxu0 0.0
    %1578 = vmatpush1.msra.mxu0 0.0
    %1579 = vmatprep.subr.mxu0 0.0
    %1580 = vmatpush1.msra.mxu0 0.0
    %1581 = vmatprep.subr.mxu0 0.0
    %1582 = vmatpush1.msra.mxu0 0.0
    %1583 = vmatprep.subr.mxu0 0.0
    %1584 = vmatpush1.msra.mxu0 0.0
    %1585 = vmatprep.subr.mxu0 0.0
    %1586 = vmatpush1.msra.mxu0 0.0
    %1587 = vmatprep.subr.mxu0 0.0
    %1588 = vmatpush1.msra.mxu0 0.0
    %1589 = vmatprep.subr.mxu0 0.0
    %1590 = vmatpush1.msra.mxu0 0.0
    %1591 = vmatprep.subr.mxu0 0.0
    %1592 = vmatpush1.msra.mxu0 0.0
    %1593 = vmatprep.subr.mxu0 0.0
    %1594 = vmatpush1.msra.mxu0 0.0
    %1595 = vmatprep.subr.mxu0 0.0
    %1596 = vmatpush1.msra.mxu0 0.0
    %1597 = vmatprep.subr.mxu0 0.0
    %1598 = vmatpush1.msra.mxu0 0.0
    %1599 = vmatprep.subr.mxu0 0.0
    %1600 = vmatpush1.msra.mxu0 0.0
    %1601 = vmatprep.subr.mxu0 0.0
    %1602 = vmatpush1.msra.mxu0 0.0
    %1603 = vmatprep.subr.mxu0 0.0
    %1604 = vmatpush1.msra.mxu0 0.0
    %1605 = vmatprep.subr.mxu0 0.0
    %1606 = vmatpush1.msra.mxu0 0.0
    %1607 = vmatprep.subr.mxu0 0.0
    %1608 = vmatpush1.msra.mxu0 0.0
    %1609 = vmatprep.subr.mxu0 0.0
    %1610 = vmatpush1.msra.mxu0 0.0
    %1611 = vmatprep.subr.mxu0 0.0
    %1612 = vmatpush1.msra.mxu0 0.0
    %1613 = vmatprep.subr.mxu0 0.0
    %1614 = vmatpush1.msra.mxu0 0.0
    %1615 = vmatprep.subr.mxu0 0.0
    %1616 = vmatpush1.msra.mxu0 0.0
    %1617 = vmatprep.subr.mxu0 0.0
    %1618 = vmatpush1.msra.mxu0 0.0
    %1619 = vmatprep.subr.mxu0 0.0
    %1620 = vmatpush1.msra.mxu0 0.0
    %1621 = vmatprep.subr.mxu0 0.0
    %1622 = vmatpush1.msra.mxu0 0.0
    %1623 = vmatprep.subr.mxu0 0.0
    %1624 = vmatpush1.msra.mxu0 0.0
    %1625 = vmatprep.subr.mxu0 0.0
    %1626 = vmatpush1.msra.mxu0 0.0
    %1627 = vmatprep.subr.mxu0 0.0
    %1628 = vmatpush1.msra.mxu0 0.0
    %1629 = vmatprep.subr.mxu0 0.0
    %1630 = vmatpush1.msra.mxu0 0.0
    %1631 = vmatprep.mubr.f32.mxu0 0.0
    %1632 = vmatmul.mubr.f32.gmra.mrb[0].mxu0 %v1426
    %v1633 = vpop.f32.mrb[0].mxu0
    %v1634 = vadd.f32 0.0, %v1633
    %v1635 = vpop.f32.mrb[0].mxu0
    %1636 = vmatprep.mubr.f32.mxu0 0.0
    %1637 = vmatmul.mubr.f32.gmra.mrb[0].mxu0 %v1429
    %v1638 = vpop.f32.mrb[0].mxu0
    %v1639 = vadd.f32 0.0, %v1638
    %v1640 = vpop.f32.mrb[0].mxu0
    %1641 = vmatprep.mubr.f32.mxu0 0.0
    %1642 = vmatmul.mubr.f32.gmra.mrb[0].mxu0 %v1432
    %v1643 = vpop.f32.mrb[0].mxu0
    %v1644 = vadd.f32 0.0, %v1643
    %v1645 = vpop.f32.mrb[0].mxu0
    %1646 = vmatprep.mubr.f32.mxu0 0.0
    %1647 = vmatmul.mubr.f32.gmra.mrb[0].mxu0 %v1435
    %v1648 = vpop.f32.mrb[0].mxu0
    %v1649 = vadd.f32 0.0, %v1648
    %v1650 = vpop.f32.mrb[0].mxu0
    %1651 = vmatprep.mubr.f32.mxu0 0.0
    %1652 = vmatmul.mubr.f32.gmra.mrb[0].mxu0 %v1438
    %v1653 = vpop.f32.mrb[0].mxu0
    %v1654 = vadd.f32 0.0, %v1653
    %v1655 = vpop.f32.mrb[0].mxu0
    %1656 = vmatprep.mubr.f32.mxu0 0.0
    %1657 = vmatmul.mubr.f32.gmra.mrb[0].mxu0 %v1441
    %v1658 = vpop.f32.mrb[0].mxu0
    %v1659 = vadd.f32 0.0, %v1658
    %v1660 = vpop.f32.mrb[0].mxu0
    %1661 = vmatprep.mubr.f32.mxu0 0.0
    %1662 = vmatmul.mubr.f32.gmra.mrb[0].mxu0 %v1444
    %v1663 = vpop.f32.mrb[0].mxu0
    %v1664 = vadd.f32 0.0, %v1663
    %v1665 = vpop.f32.mrb[0].mxu0
    %1666 = vmatprep.mubr.f32.mxu0 0.0
    %1667 = vmatmul.mubr.f32.gmra.mrb[0].mxu0 %v1447
    %v1668 = vpop.f32.mrb[0].mxu0
    %v1669 = vadd.f32 0.0, %v1668
    %v1670 = vpop.f32.mrb[0].mxu0
    %1671 = vdwg.mxu0
    %v1672 = vmul.f32 %v1634, %v118
    %v1673 = vmul.f32 %v1639, %v119
    %v1674 = vmul.f32 %v1644, %v120
    %v1675 = vmul.f32 %v1649, %v121
    %v1676 = vmul.f32 %v1654, %v122
    %v1677 = vmul.f32 %v1659, %v123
    %v1678 = vmul.f32 %v1664, %v124
    %v1679 = vmul.f32 %v1669, %v125
    %v1681 = vsel %vm137, %v1307, 0
    %v1684 = vsel %vm137, %v1312, 0
    %v1687 = vsel %vm137, %v1554, 0
    %v1690 = vsel %vm137, %v1555, 0
    %v1693 = vsel %vm137, %v1556, 0
    %v1696 = vsel %vm137, %v1557, 0
    %v1699 = vsel %vm137, %v1558, 0
    %v1702 = vsel %vm137, %v1559, 0
    %v1705 = vsel %vm137, %v1560, 0
    %v1708 = vsel %vm137, %v1561, 0
    %1710 = vmatprep.subr.mxu0 0.0
    %1711 = vmatpush1.xpose.msra.mxu0 %v1687
    %1712 = vmatprep.subr.mxu0 0.0
    %1713 = vmatpush1.xpose.msra.mxu0 %v1690
    %1714 = vmatprep.subr.mxu0 0.0
    %1715 = vmatpush1.xpose.msra.mxu0 %v1693
    %1716 = vmatprep.subr.mxu0 0.0
    %1717 = vmatpush1.xpose.msra.mxu0 %v1696
    %1718 = vmatprep.subr.mxu0 0.0
    %1719 = vmatpush1.xpose.msra.mxu0 %v1699
    %1720 = vmatprep.subr.mxu0 0.0
    %1721 = vmatpush1.xpose.msra.mxu0 %v1702
    %1722 = vmatprep.subr.mxu0 0.0
    %1723 = vmatpush1.xpose.msra.mxu0 %v1705
    %1724 = vmatprep.subr.mxu0 0.0
    %1725 = vmatpush1.xpose.msra.mxu0 %v1708
    %1726 = vmatprep.subr.mxu0 0.0
    %1727 = vmatpush1.xpose.msra.mxu0 0.0
    %1728 = vmatprep.subr.mxu0 0.0
    %1729 = vmatpush1.xpose.msra.mxu0 0.0
    %1730 = vmatprep.subr.mxu0 0.0
    %1731 = vmatpush1.xpose.msra.mxu0 0.0
    %1732 = vmatprep.subr.mxu0 0.0
    %1733 = vmatpush1.xpose.msra.mxu0 0.0
    %1734 = vmatprep.subr.mxu0 0.0
    %1735 = vmatpush1.xpose.msra.mxu0 0.0
    %1736 = vmatprep.subr.mxu0 0.0
    %1737 = vmatpush1.xpose.msra.mxu0 0.0
    %1738 = vmatprep.subr.mxu0 0.0
    %1739 = vmatpush1.xpose.msra.mxu0 0.0
    %1740 = vmatprep.subr.mxu0 0.0
    %1741 = vmatpush1.xpose.msra.mxu0 0.0
    %1742 = vmatprep.subr.mxu0 0.0
    %1743 = vmatpush1.xpose.msra.mxu0 0.0
    %1744 = vmatprep.subr.mxu0 0.0
    %1745 = vmatpush1.xpose.msra.mxu0 0.0
    %1746 = vmatprep.subr.mxu0 0.0
    %1747 = vmatpush1.xpose.msra.mxu0 0.0
    %1748 = vmatprep.subr.mxu0 0.0
    %1749 = vmatpush1.xpose.msra.mxu0 0.0
    %1750 = vmatprep.subr.mxu0 0.0
    %1751 = vmatpush1.xpose.msra.mxu0 0.0
    %1752 = vmatprep.subr.mxu0 0.0
    %1753 = vmatpush1.xpose.msra.mxu0 0.0
    %1754 = vmatprep.subr.mxu0 0.0
    %1755 = vmatpush1.xpose.msra.mxu0 0.0
    %1756 = vmatprep.subr.mxu0 0.0
    %1757 = vmatpush1.xpose.msra.mxu0 0.0
    %1758 = vmatprep.subr.mxu0 0.0
    %1759 = vmatpush1.xpose.msra.mxu0 0.0
    %1760 = vmatprep.subr.mxu0 0.0
    %1761 = vmatpush1.xpose.msra.mxu0 0.0
    %1762 = vmatprep.subr.mxu0 0.0
    %1763 = vmatpush1.xpose.msra.mxu0 0.0
    %1764 = vmatprep.subr.mxu0 0.0
    %1765 = vmatpush1.xpose.msra.mxu0 0.0
    %1766 = vmatprep.subr.mxu0 0.0
    %1767 = vmatpush1.xpose.msra.mxu0 0.0
    %1768 = vmatprep.subr.mxu0 0.0
    %1769 = vmatpush1.xpose.msra.mxu0 0.0
    %1770 = vmatprep.subr.mxu0 0.0
    %1771 = vmatpush1.xpose.msra.mxu0 0.0
    %1772 = vmatprep.subr.mxu0 0.0
    %1773 = vmatpush1.xpose.msra.mxu0 0.0
    %1774 = vmatprep.mubr.f32.mxu0 0.0
    %1775 = vmatmul.mubr.f32.gmra.mrb[0].mxu0 %v1681
    %v1776 = vpop.f32.mrb[0].mxu0
    %v1777 = vadd.f32 %v108, %v1776
    %v1778 = vpop.f32.mrb[0].mxu0
    %1779 = vmatprep.mubr.f32.mxu0 0.0
    %1780 = vmatmul.mubr.f32.gmra.mrb[0].mxu0 %v1684
    %v1781 = vpop.f32.mrb[0].mxu0
    %v1782 = vadd.f32 %v109, %v1781
    %v1783 = vpop.f32.mrb[0].mxu0
    %1784 = vdwg.mxu0
    %v1785 = vsel %vm737, %v1777, -inf
    %1786 = vmax.xlane.f32.xlu0 %v1785
    %v1787 = vpop.xlane.xlu0 %1786
    %v1788 = vsel %vm737, %v1782, -inf
    %1789 = vmax.xlane.f32.xlu0 %v1788
    %v1790 = vpop.xlane.xlu0 %1789
    %v1791 = vsub.f32 %v1777, %v1787
    %v1792 = vsub.f32 %v1782, %v1790
    %v1793 = vmul.f32 %v1791, 1.442695
    %v1794 = vpow.pop %v1793
    %v1795 = vmul.f32 %v1792, 1.442695
    %v1796 = vpow.pop %v1795
    %v1798 = vsel %vm737, %v1794, 0
    %v1801 = vsel %vm737, %v1796, 0
    %1803 = vmatprep.subr.mxu0 0.0
    %1804 = vmatpush1.msra.mxu0 %v126
    %1805 = vmatprep.subr.mxu0 0.0
    %1806 = vmatpush1.msra.mxu0 %v127
    %1807 = vmatprep.subr.mxu0 0.0
    %1808 = vmatpush1.msra.mxu0 %v128
    %1809 = vmatprep.subr.mxu0 0.0
    %1810 = vmatpush1.msra.mxu0 %v129
    %1811 = vmatprep.subr.mxu0 0.0
    %1812 = vmatpush1.msra.mxu0 %v130
    %1813 = vmatprep.subr.mxu0 0.0
    %1814 = vmatpush1.msra.mxu0 %v131
    %1815 = vmatprep.subr.mxu0 0.0
    %1816 = vmatpush1.msra.mxu0 %v132
    %1817 = vmatprep.subr.mxu0 0.0
    %1818 = vmatpush1.msra.mxu0 %v133
    %1819 = vmatprep.subr.mxu0 0.0
    %1820 = vmatpush1.msra.mxu0 0.0
    %1821 = vmatprep.subr.mxu0 0.0
    %1822 = vmatpush1.msra.mxu0 0.0
    %1823 = vmatprep.subr.mxu0 0.0
    %1824 = vmatpush1.msra.mxu0 0.0
    %1825 = vmatprep.subr.mxu0 0.0
    %1826 = vmatpush1.msra.mxu0 0.0
    %1827 = vmatprep.subr.mxu0 0.0
    %1828 = vmatpush1.msra.mxu0 0.0
    %1829 = vmatprep.subr.mxu0 0.0
    %1830 = vmatpush1.msra.mxu0 0.0
    %1831 = vmatprep.subr.mxu0 0.0
    %1832 = vmatpush1.msra.mxu0 0.0
    %1833 = vmatprep.subr.mxu0 0.0
    %1834 = vmatpush1.msra.mxu0 0.0
    %1835 = vmatprep.subr.mxu0 0.0
    %1836 = vmatpush1.msra.mxu0 0.0
    %1837 = vmatprep.subr.mxu0 0.0
    %1838 = vmatpush1.msra.mxu0 0.0
    %1839 = vmatprep.subr.mxu0 0.0
    %1840 = vmatpush1.msra.mxu0 0.0
    %1841 = vmatprep.subr.mxu0 0.0
    %1842 = vmatpush1.msra.mxu0 0.0
    %1843 = vmatprep.subr.mxu0 0.0
    %1844 = vmatpush1.msra.mxu0 0.0
    %1845 = vmatprep.subr.mxu0 0.0
    %1846 = vmatpush1.msra.mxu0 0.0
    %1847 = vmatprep.subr.mxu0 0.0
    %1848 = vmatpush1.msra.mxu0 0.0
    %1849 = vmatprep.subr.mxu0 0.0
    %1850 = vmatpush1.msra.mxu0 0.0
    %1851 = vmatprep.subr.mxu0 0.0
    %1852 = vmatpush1.msra.mxu0 0.0
    %1853 = vmatprep.subr.mxu0 0.0
    %1854 = vmatpush1.msra.mxu0 0.0
    %1855 = vmatprep.subr.mxu0 0.0
    %1856 = vmatpush1.msra.mxu0 0.0
    %1857 = vmatprep.subr.mxu0 0.0
    %1858 = vmatpush1.msra.mxu0 0.0
    %1859 = vmatprep.subr.mxu0 0.0
    %1860 = vmatpush1.msra.mxu0 0.0
    %1861 = vmatprep.subr.mxu0 0.0
    %1862 = vmatpush1.msra.mxu0 0.0
    %1863 = vmatprep.subr.mxu0 0.0
    %1864 = vmatpush1.msra.mxu0 0.0
    %1865 = vmatprep.subr.mxu0 0.0
    %1866 = vmatpush1.msra.mxu0 0.0
    %1867 = vmatprep.mubr.f32.mxu0 0.0
    %1868 = vmatmul.mubr.f32.gmra.mrb[0].mxu0 %v1798
    %v1869 = vpop.f32.mrb[0].mxu0
    %v1870 = vadd.f32 0.0, %v1869
    %v1871 = vpop.f32.mrb[0].mxu0
    %1872 = vmatprep.mubr.f32.mxu0 0.0
    %1873 = vmatmul.mubr.f32.gmra.mrb[0].mxu0 %v1801
    %v1874 = vpop.f32.mrb[0].mxu0
    %v1875 = vadd.f32 0.0, %v1874
    %v1876 = vpop.f32.mrb[0].mxu0
    %1877 = vdwg.mxu0
    %v1878 = vmax.f32 %v1870, 1e-30
    %v1879 = vmax.f32 %v1875, 1e-30
    %v1880 = vrcp.pop %v1878
    %v1881 = vrcp.pop %v1879
    %v1882 = vmul.f32 %v1794, %v1880
    %v1883 = vmul.f32 %v1796, %v1881
    %v1885 = vsel %vm737, %v1882, 0
    %v1888 = vsel %vm737, %v1883, 0
    %1890 = vmatprep.subr.mxu0 0.0
    %1891 = vmatpush1.msra.mxu0 %v1672
    %1892 = vmatprep.subr.mxu0 0.0
    %1893 = vmatpush1.msra.mxu0 %v1673
    %1894 = vmatprep.subr.mxu0 0.0
    %1895 = vmatpush1.msra.mxu0 %v1674
    %1896 = vmatprep.subr.mxu0 0.0
    %1897 = vmatpush1.msra.mxu0 %v1675
    %1898 = vmatprep.subr.mxu0 0.0
    %1899 = vmatpush1.msra.mxu0 %v1676
    %1900 = vmatprep.subr.mxu0 0.0
    %1901 = vmatpush1.msra.mxu0 %v1677
    %1902 = vmatprep.subr.mxu0 0.0
    %1903 = vmatpush1.msra.mxu0 %v1678
    %1904 = vmatprep.subr.mxu0 0.0
    %1905 = vmatpush1.msra.mxu0 %v1679
    %1906 = vmatprep.subr.mxu0 0.0
    %1907 = vmatpush1.msra.mxu0 0.0
    %1908 = vmatprep.subr.mxu0 0.0
    %1909 = vmatpush1.msra.mxu0 0.0
    %1910 = vmatprep.subr.mxu0 0.0
    %1911 = vmatpush1.msra.mxu0 0.0
    %1912 = vmatprep.subr.mxu0 0.0
    %1913 = vmatpush1.msra.mxu0 0.0
    %1914 = vmatprep.subr.mxu0 0.0
    %1915 = vmatpush1.msra.mxu0 0.0
    %1916 = vmatprep.subr.mxu0 0.0
    %1917 = vmatpush1.msra.mxu0 0.0
    %1918 = vmatprep.subr.mxu0 0.0
    %1919 = vmatpush1.msra.mxu0 0.0
    %1920 = vmatprep.subr.mxu0 0.0
    %1921 = vmatpush1.msra.mxu0 0.0
    %1922 = vmatprep.subr.mxu0 0.0
    %1923 = vmatpush1.msra.mxu0 0.0
    %1924 = vmatprep.subr.mxu0 0.0
    %1925 = vmatpush1.msra.mxu0 0.0
    %1926 = vmatprep.subr.mxu0 0.0
    %1927 = vmatpush1.msra.mxu0 0.0
    %1928 = vmatprep.subr.mxu0 0.0
    %1929 = vmatpush1.msra.mxu0 0.0
    %1930 = vmatprep.subr.mxu0 0.0
    %1931 = vmatpush1.msra.mxu0 0.0
    %1932 = vmatprep.subr.mxu0 0.0
    %1933 = vmatpush1.msra.mxu0 0.0
    %1934 = vmatprep.subr.mxu0 0.0
    %1935 = vmatpush1.msra.mxu0 0.0
    %1936 = vmatprep.subr.mxu0 0.0
    %1937 = vmatpush1.msra.mxu0 0.0
    %1938 = vmatprep.subr.mxu0 0.0
    %1939 = vmatpush1.msra.mxu0 0.0
    %1940 = vmatprep.subr.mxu0 0.0
    %1941 = vmatpush1.msra.mxu0 0.0
    %1942 = vmatprep.subr.mxu0 0.0
    %1943 = vmatpush1.msra.mxu0 0.0
    %1944 = vmatprep.subr.mxu0 0.0
    %1945 = vmatpush1.msra.mxu0 0.0
    %1946 = vmatprep.subr.mxu0 0.0
    %1947 = vmatpush1.msra.mxu0 0.0
    %1948 = vmatprep.subr.mxu0 0.0
    %1949 = vmatpush1.msra.mxu0 0.0
    %1950 = vmatprep.subr.mxu0 0.0
    %1951 = vmatpush1.msra.mxu0 0.0
    %1952 = vmatprep.subr.mxu0 0.0
    %1953 = vmatpush1.msra.mxu0 0.0
    %1954 = vmatprep.mubr.f32.mxu0 0.0
    %1955 = vmatmul.mubr.f32.gmra.mrb[0].mxu0 %v1885
    %v1956 = vpop.f32.mrb[0].mxu0
    %v1957 = vadd.f32 0.0, %v1956
    %v1958 = vpop.f32.mrb[0].mxu0
    %1959 = vmatprep.mubr.f32.mxu0 0.0
    %1960 = vmatmul.mubr.f32.gmra.mrb[0].mxu0 %v1888
    %v1961 = vpop.f32.mrb[0].mxu0
    %v1962 = vadd.f32 0.0, %v1961
    %v1963 = vpop.f32.mrb[0].mxu0
    %1964 = vdwg.mxu0
    %s1965 = scalar_lea.vmem %s10, 32
    %v1966 = vld [vmem:[%s1965] sm:$0xff]
    %v1967 = vld [vmem:[%s1965 + $0x8] sm:$0xff]
    %v1968 = vld [vmem:[%s1965 + $0x10] sm:$0xff]
    %v1969 = vld [vmem:[%s1965 + $0x18] sm:$0xff]
    %v1971 = vsel %vm137, %v1957, 0
    %v1974 = vsel %vm137, %v1962, 0
    %1976 = vmatprep.subr.mxu0 0.0
    %1977 = vmatpush1.msra.mxu0 %v1966
    %1978 = vmatprep.subr.mxu0 0.0
    %1979 = vmatpush1.msra.mxu0 %v1967
    %1980 = vmatprep.subr.mxu0 0.0
    %1981 = vmatpush1.msra.mxu0 %v1968
    %1982 = vmatprep.subr.mxu0 0.0
    %1983 = vmatpush1.msra.mxu0 %v1969
    %1984 = vmatprep.subr.mxu0 0.0
    %1985 = vmatpush1.msra.mxu0 0.0
    %1986 = vmatprep.subr.mxu0 0.0
    %1987 = vmatpush1.msra.mxu0 0.0
    %1988 = vmatprep.subr.mxu0 0.0
    %1989 = vmatpush1.msra.mxu0 0.0
    %1990 = vmatprep.subr.mxu0 0.0
    %1991 = vmatpush1.msra.mxu0 0.0
    %1992 = vmatprep.subr.mxu0 0.0
    %1993 = vmatpush1.msra.mxu0 0.0
    %1994 = vmatprep.subr.mxu0 0.0
    %1995 = vmatpush1.msra.mxu0 0.0
    %1996 = vmatprep.subr.mxu0 0.0
    %1997 = vmatpush1.msra.mxu0 0.0
    %1998 = vmatprep.subr.mxu0 0.0
    %1999 = vmatpush1.msra.mxu0 0.0
    %2000 = vmatprep.subr.mxu0 0.0
    %2001 = vmatpush1.msra.mxu0 0.0
    %2002 = vmatprep.subr.mxu0 0.0
    %2003 = vmatpush1.msra.mxu0 0.0
    %2004 = vmatprep.subr.mxu0 0.0
    %2005 = vmatpush1.msra.mxu0 0.0
    %2006 = vmatprep.subr.mxu0 0.0
    %2007 = vmatpush1.msra.mxu0 0.0
    %2008 = vmatprep.subr.mxu0 0.0
    %2009 = vmatpush1.msra.mxu0 0.0
    %2010 = vmatprep.subr.mxu0 0.0
    %2011 = vmatpush1.msra.mxu0 0.0
    %2012 = vmatprep.subr.mxu0 0.0
    %2013 = vmatpush1.msra.mxu0 0.0
    %2014 = vmatprep.subr.mxu0 0.0
    %2015 = vmatpush1.msra.mxu0 0.0
    %2016 = vmatprep.subr.mxu0 0.0
    %2017 = vmatpush1.msra.mxu0 0.0
    %2018 = vmatprep.subr.mxu0 0.0
    %2019 = vmatpush1.msra.mxu0 0.0
    %2020 = vmatprep.subr.mxu0 0.0
    %2021 = vmatpush1.msra.mxu0 0.0
    %2022 = vmatprep.subr.mxu0 0.0
    %2023 = vmatpush1.msra.mxu0 0.0
    %2024 = vmatprep.subr.mxu0 0.0
    %2025 = vmatpush1.msra.mxu0 0.0
    %2026 = vmatprep.subr.mxu0 0.0
    %2027 = vmatpush1.msra.mxu0 0.0
    %2028 = vmatprep.subr.mxu0 0.0
    %2029 = vmatpush1.msra.mxu0 0.0
    %2030 = vmatprep.subr.mxu0 0.0
    %2031 = vmatpush1.msra.mxu0 0.0
    %2032 = vmatprep.subr.mxu0 0.0
    %2033 = vmatpush1.msra.mxu0 0.0
    %2034 = vmatprep.subr.mxu0 0.0
    %2035 = vmatpush1.msra.mxu0 0.0
    %2036 = vmatprep.subr.mxu0 0.0
    %2037 = vmatpush1.msra.mxu0 0.0
    %2038 = vmatprep.subr.mxu0 0.0
    %2039 = vmatpush1.msra.mxu0 0.0
    %2040 = vmatprep.mubr.f32.mxu0 0.0
    %2041 = vmatmul.mubr.f32.gmra.mrb[0].mxu0 %v1971
    %v2042 = vpop.f32.mrb[0].mxu0
    %v2043 = vadd.f32 0.0, %v2042
    %v2044 = vpop.f32.mrb[0].mxu0
    %2045 = vmatprep.mubr.f32.mxu0 0.0
    %2046 = vmatmul.mubr.f32.gmra.mrb[0].mxu0 %v1974
    %v2047 = vpop.f32.mrb[0].mxu0
    %v2048 = vadd.f32 0.0, %v2047
    %v2049 = vpop.f32.mrb[0].mxu0
    %2050 = vdwg.mxu0
    %v2051 = vadd.f32 %v1204, %v2043
    %v2052 = vadd.f32 %v1205, %v2048
    %v2053 = vld [vmem:[%s11 + $0x1] sm:$0x1]
    %v2054 = vmul.f32 %v2051, %v2051
    %v2055 = vmul.f32 %v2052, %v2052
    %v2056 = vsel %vm137, %v2054, 0.0
    %2057 = vadd.xlane.f32.xlu0 %v2056
    %v2058 = vpop.xlane.xlu0 %2057
    %v2059 = vsel %vm137, %v2055, 0.0
    %2060 = vadd.xlane.f32.xlu0 %v2059
    %v2061 = vpop.xlane.xlu0 %2060
    %v2062 = vmul.f32 %v2058, %v144
    %v2063 = vmul.f32 %v2061, %v144
    %v2064 = vadd.f32 %v2062, 1e-06
    %v2065 = vadd.f32 %v2063, 1e-06
    %v2066 = vrsqrt.pop %v2064
    %v2067 = vrsqrt.pop %v2065
    %v2068 = vmul.f32 %v2051, %v2066
    %v2069 = vmul.f32 %v2052, %v2067
    %v2070 = vlaneseq
    %v2071 = vshrl.u32 %v2070, 7
    %v2072 = vsub.s32 0, %v2071
    %v2073 = vrot.slane %v2053, %v2072
    %v2074 = vmul.f32 %v2068, %v2073
    %v2075 = vmul.f32 %v2069, %v2073
    %s2076 = scalar_lea.vmem [#allocation8], 32
    %v2077 = vld [vmem:[%s2076] sm:$0xff]
    %v2078 = vld [vmem:[%s2076 + $0x8] sm:$0xff]
    %v2079 = vld [vmem:[%s2076 + $0x10] sm:$0xff]
    %v2080 = vld [vmem:[%s2076 + $0x18] sm:$0xff]
    %v2082 = vsel %vm137, %v2074, 0
    %v2085 = vsel %vm137, %v2075, 0
    %2087 = vmatprep.subr.mxu0 0.0
    %2088 = vmatpush1.msra.mxu0 %v2077
    %2089 = vmatprep.subr.mxu0 0.0
    %2090 = vmatpush1.msra.mxu0 %v2078
    %2091 = vmatprep.subr.mxu0 0.0
    %2092 = vmatpush1.msra.mxu0 %v2079
    %2093 = vmatprep.subr.mxu0 0.0
    %2094 = vmatpush1.msra.mxu0 %v2080
    %2095 = vmatprep.subr.mxu0 0.0
    %2096 = vmatpush1.msra.mxu0 0.0
    %2097 = vmatprep.subr.mxu0 0.0
    %2098 = vmatpush1.msra.mxu0 0.0
    %2099 = vmatprep.subr.mxu0 0.0
    %2100 = vmatpush1.msra.mxu0 0.0
    %2101 = vmatprep.subr.mxu0 0.0
    %2102 = vmatpush1.msra.mxu0 0.0
    %2103 = vmatprep.subr.mxu0 0.0
    %2104 = vmatpush1.msra.mxu0 0.0
    %2105 = vmatprep.subr.mxu0 0.0
    %2106 = vmatpush1.msra.mxu0 0.0
    %2107 = vmatprep.subr.mxu0 0.0
    %2108 = vmatpush1.msra.mxu0 0.0
    %2109 = vmatprep.subr.mxu0 0.0
    %2110 = vmatpush1.msra.mxu0 0.0
    %2111 = vmatprep.subr.mxu0 0.0
    %2112 = vmatpush1.msra.mxu0 0.0
    %2113 = vmatprep.subr.mxu0 0.0
    %2114 = vmatpush1.msra.mxu0 0.0
    %2115 = vmatprep.subr.mxu0 0.0
    %2116 = vmatpush1.msra.mxu0 0.0
    %2117 = vmatprep.subr.mxu0 0.0
    %2118 = vmatpush1.msra.mxu0 0.0
    %2119 = vmatprep.subr.mxu0 0.0
    %2120 = vmatpush1.msra.mxu0 0.0
    %2121 = vmatprep.subr.mxu0 0.0
    %2122 = vmatpush1.msra.mxu0 0.0
    %2123 = vmatprep.subr.mxu0 0.0
    %2124 = vmatpush1.msra.mxu0 0.0
    %2125 = vmatprep.subr.mxu0 0.0
    %2126 = vmatpush1.msra.mxu0 0.0
    %2127 = vmatprep.subr.mxu0 0.0
    %2128 = vmatpush1.msra.mxu0 0.0
    %2129 = vmatprep.subr.mxu0 0.0
    %2130 = vmatpush1.msra.mxu0 0.0
    %2131 = vmatprep.subr.mxu0 0.0
    %2132 = vmatpush1.msra.mxu0 0.0
    %2133 = vmatprep.subr.mxu0 0.0
    %2134 = vmatpush1.msra.mxu0 0.0
    %2135 = vmatprep.subr.mxu0 0.0
    %2136 = vmatpush1.msra.mxu0 0.0
    %2137 = vmatprep.subr.mxu0 0.0
    %2138 = vmatpush1.msra.mxu0 0.0
    %2139 = vmatprep.subr.mxu0 0.0
    %2140 = vmatpush1.msra.mxu0 0.0
    %2141 = vmatprep.subr.mxu0 0.0
    %2142 = vmatpush1.msra.mxu0 0.0
    %2143 = vmatprep.subr.mxu0 0.0
    %2144 = vmatpush1.msra.mxu0 0.0
    %2145 = vmatprep.subr.mxu0 0.0
    %2146 = vmatpush1.msra.mxu0 0.0
    %2147 = vmatprep.subr.mxu0 0.0
    %2148 = vmatpush1.msra.mxu0 0.0
    %2149 = vmatprep.subr.mxu0 0.0
    %2150 = vmatpush1.msra.mxu0 0.0
    %2151 = vmatprep.mubr.f32.mxu0 0.0
    %2152 = vmatmul.mubr.f32.gmra.mrb[0].mxu0 %v2082
    %v2153 = vpop.f32.mrb[0].mxu0
    %v2154 = vadd.f32 0.0, %v2153
    %v2155 = vpop.f32.mrb[0].mxu0
    %2156 = vmatprep.mubr.f32.mxu0 0.0
    %2157 = vmatmul.mubr.f32.gmra.mrb[0].mxu0 %v2085
    %v2158 = vpop.f32.mrb[0].mxu0
    %v2159 = vadd.f32 0.0, %v2158
    %v2160 = vpop.f32.mrb[0].mxu0
    %2161 = vdwg.mxu0
    %v2162 = vmax.f32 %v2154, 0.0
    %v2163 = vmax.f32 %v2159, 0.0
    %s2164 = scalar_lea.vmem %s13, 64
    %v2165 = vld [vmem:[%s2164] sm:$0xff]
    %v2166 = vld [vmem:[%s2164 + $0x8] sm:$0xff]
    %v2167 = vld [vmem:[%s2164 + $0x10] sm:$0xff]
    %v2168 = vld [vmem:[%s2164 + $0x18] sm:$0xff]
    %v2169 = vld [vmem:[%s2164 + $0x20] sm:$0xff]
    %v2170 = vld [vmem:[%s2164 + $0x28] sm:$0xff]
    %v2171 = vld [vmem:[%s2164 + $0x30] sm:$0xff]
    %v2172 = vld [vmem:[%s2164 + $0x38] sm:$0xff]
    %v2174 = vsel %vm737, %v2162, 0
    %v2177 = vsel %vm737, %v2163, 0
    %2179 = vmatprep.subr.mxu0 0.0
    %2180 = vmatpush1.msra.mxu0 %v2165
    %2181 = vmatprep.subr.mxu0 0.0
    %2182 = vmatpush1.msra.mxu0 %v2166
    %2183 = vmatprep.subr.mxu0 0.0
    %2184 = vmatpush1.msra.mxu0 %v2167
    %2185 = vmatprep.subr.mxu0 0.0
    %2186 = vmatpush1.msra.mxu0 %v2168
    %2187 = vmatprep.subr.mxu0 0.0
    %2188 = vmatpush1.msra.mxu0 %v2169
    %2189 = vmatprep.subr.mxu0 0.0
    %2190 = vmatpush1.msra.mxu0 %v2170
    %2191 = vmatprep.subr.mxu0 0.0
    %2192 = vmatpush1.msra.mxu0 %v2171
    %2193 = vmatprep.subr.mxu0 0.0
    %2194 = vmatpush1.msra.mxu0 %v2172
    %2195 = vmatprep.subr.mxu0 0.0
    %2196 = vmatpush1.msra.mxu0 0.0
    %2197 = vmatprep.subr.mxu0 0.0
    %2198 = vmatpush1.msra.mxu0 0.0
    %2199 = vmatprep.subr.mxu0 0.0
    %2200 = vmatpush1.msra.mxu0 0.0
    %2201 = vmatprep.subr.mxu0 0.0
    %2202 = vmatpush1.msra.mxu0 0.0
    %2203 = vmatprep.subr.mxu0 0.0
    %2204 = vmatpush1.msra.mxu0 0.0
    %2205 = vmatprep.subr.mxu0 0.0
    %2206 = vmatpush1.msra.mxu0 0.0
    %2207 = vmatprep.subr.mxu0 0.0
    %2208 = vmatpush1.msra.mxu0 0.0
    %2209 = vmatprep.subr.mxu0 0.0
    %2210 = vmatpush1.msra.mxu0 0.0
    %2211 = vmatprep.subr.mxu0 0.0
    %2212 = vmatpush1.msra.mxu0 0.0
    %2213 = vmatprep.subr.mxu0 0.0
    %2214 = vmatpush1.msra.mxu0 0.0
    %2215 = vmatprep.subr.mxu0 0.0
    %2216 = vmatpush1.msra.mxu0 0.0
    %2217 = vmatprep.subr.mxu0 0.0
    %2218 = vmatpush1.msra.mxu0 0.0
    %2219 = vmatprep.subr.mxu0 0.0
    %2220 = vmatpush1.msra.mxu0 0.0
    %2221 = vmatprep.subr.mxu0 0.0
    %2222 = vmatpush1.msra.mxu0 0.0
    %2223 = vmatprep.subr.mxu0 0.0
    %2224 = vmatpush1.msra.mxu0 0.0
    %2225 = vmatprep.subr.mxu0 0.0
    %2226 = vmatpush1.msra.mxu0 0.0
    %2227 = vmatprep.subr.mxu0 0.0
    %2228 = vmatpush1.msra.mxu0 0.0
    %2229 = vmatprep.subr.mxu0 0.0
    %2230 = vmatpush1.msra.mxu0 0.0
    %2231 = vmatprep.subr.mxu0 0.0
    %2232 = vmatpush1.msra.mxu0 0.0
    %2233 = vmatprep.subr.mxu0 0.0
    %2234 = vmatpush1.msra.mxu0 0.0
    %2235 = vmatprep.subr.mxu0 0.0
    %2236 = vmatpush1.msra.mxu0 0.0
    %2237 = vmatprep.subr.mxu0 0.0
    %2238 = vmatpush1.msra.mxu0 0.0
    %2239 = vmatprep.subr.mxu0 0.0
    %2240 = vmatpush1.msra.mxu0 0.0
    %2241 = vmatprep.subr.mxu0 0.0
    %2242 = vmatpush1.msra.mxu0 0.0
    %2243 = vmatprep.mubr.f32.mxu0 0.0
    %2244 = vmatmul.mubr.f32.gmra.mrb[0].mxu0 %v2174
    %v2245 = vpop.f32.mrb[0].mxu0
    %v2246 = vadd.f32 0.0, %v2245
    %v2247 = vpop.f32.mrb[0].mxu0
    %2248 = vmatprep.mubr.f32.mxu0 0.0
    %2249 = vmatmul.mubr.f32.gmra.mrb[0].mxu0 %v2177
    %v2250 = vpop.f32.mrb[0].mxu0
    %v2251 = vadd.f32 0.0, %v2250
    %v2252 = vpop.f32.mrb[0].mxu0
    %2253 = vdwg.mxu0
    %v2254 = vadd.f32 %v2051, %v2246
    %v2255 = vadd.f32 %v2052, %v2251
    %v2256 = vld [vmem:[%s14] sm:$0x1]
    %v2257 = vmul.f32 %v2254, %v2254
    %v2258 = vmul.f32 %v2255, %v2255
    %v2259 = vsel %vm137, %v2257, 0.0
    %2260 = vadd.xlane.f32.xlu0 %v2259
    %v2261 = vpop.xlane.xlu0 %2260
    %v2262 = vsel %vm137, %v2258, 0.0
    %2263 = vadd.xlane.f32.xlu0 %v2262
    %v2264 = vpop.xlane.xlu0 %2263
    %v2265 = vmul.f32 %v2261, %v144
    %v2266 = vmul.f32 %v2264, %v144
    %v2267 = vadd.f32 %v2265, 1e-06
    %v2268 = vadd.f32 %v2266, 1e-06
    %v2269 = vrsqrt.pop %v2267
    %v2270 = vrsqrt.pop %v2268
    %v2271 = vmul.f32 %v2254, %v2269
    %v2272 = vmul.f32 %v2255, %v2270
    %v2274 = vlaneseq
    %v2275 = vshrl.u32 %v2274, 7
    %v2276 = vsub.s32 0, %v2275
    %v2277 = vrot.slane %v2256, %v2276
    %v2279 = vmul.f32 %v2271, %v2277
    %v2280 = vmul.f32 %v2272, %v2277
    %v2281 = vld [vmem:[#allocation7] sm:$0xff]
    %v2282 = vld [vmem:[#allocation7 + $0x8] sm:$0xff]
    %v2283 = vld [vmem:[#allocation7 + $0x10] sm:$0xff]
    %v2284 = vld [vmem:[#allocation7 + $0x18] sm:$0xff]
    %v2286 = vsel %vm137, %v2279, 0
    %v2289 = vsel %vm137, %v2280, 0
    %2291 = vmatprep.subr.mxu0 0.0
    %2292 = vmatpush1.msra.mxu0 %v2281
    %2293 = vmatprep.subr.mxu0 0.0
    %2294 = vmatpush1.msra.mxu0 %v2282
    %2295 = vmatprep.subr.mxu0 0.0
    %2296 = vmatpush1.msra.mxu0 %v2283
    %2297 = vmatprep.subr.mxu0 0.0
    %2298 = vmatpush1.msra.mxu0 %v2284
    %2299 = vmatprep.subr.mxu0 0.0
    %2300 = vmatpush1.msra.mxu0 0.0
    %2301 = vmatprep.subr.mxu0 0.0
    %2302 = vmatpush1.msra.mxu0 0.0
    %2303 = vmatprep.subr.mxu0 0.0
    %2304 = vmatpush1.msra.mxu0 0.0
    %2305 = vmatprep.subr.mxu0 0.0
    %2306 = vmatpush1.msra.mxu0 0.0
    %2307 = vmatprep.subr.mxu0 0.0
    %2308 = vmatpush1.msra.mxu0 0.0
    %2309 = vmatprep.subr.mxu0 0.0
    %2310 = vmatpush1.msra.mxu0 0.0
    %2311 = vmatprep.subr.mxu0 0.0
    %2312 = vmatpush1.msra.mxu0 0.0
    %2313 = vmatprep.subr.mxu0 0.0
    %2314 = vmatpush1.msra.mxu0 0.0
    %2315 = vmatprep.subr.mxu0 0.0
    %2316 = vmatpush1.msra.mxu0 0.0
    %2317 = vmatprep.subr.mxu0 0.0
    %2318 = vmatpush1.msra.mxu0 0.0
    %2319 = vmatprep.subr.mxu0 0.0
    %2320 = vmatpush1.msra.mxu0 0.0
    %2321 = vmatprep.subr.mxu0 0.0
    %2322 = vmatpush1.msra.mxu0 0.0
    %2323 = vmatprep.subr.mxu0 0.0
    %2324 = vmatpush1.msra.mxu0 0.0
    %2325 = vmatprep.subr.mxu0 0.0
    %2326 = vmatpush1.msra.mxu0 0.0
    %2327 = vmatprep.subr.mxu0 0.0
    %2328 = vmatpush1.msra.mxu0 0.0
    %2329 = vmatprep.subr.mxu0 0.0
    %2330 = vmatpush1.msra.mxu0 0.0
    %2331 = vmatprep.subr.mxu0 0.0
    %2332 = vmatpush1.msra.mxu0 0.0
    %2333 = vmatprep.subr.mxu0 0.0
    %2334 = vmatpush1.msra.mxu0 0.0
    %2335 = vmatprep.subr.mxu0 0.0
    %2336 = vmatpush1.msra.mxu0 0.0
    %2337 = vmatprep.subr.mxu0 0.0
    %2338 = vmatpush1.msra.mxu0 0.0
    %2339 = vmatprep.subr.mxu0 0.0
    %2340 = vmatpush1.msra.mxu0 0.0
    %2341 = vmatprep.subr.mxu0 0.0
    %2342 = vmatpush1.msra.mxu0 0.0
    %2343 = vmatprep.subr.mxu0 0.0
    %2344 = vmatpush1.msra.mxu0 0.0
    %2345 = vmatprep.subr.mxu0 0.0
    %2346 = vmatpush1.msra.mxu0 0.0
    %2347 = vmatprep.subr.mxu0 0.0
    %2348 = vmatpush1.msra.mxu0 0.0
    %2349 = vmatprep.subr.mxu0 0.0
    %2350 = vmatpush1.msra.mxu0 0.0
    %2351 = vmatprep.subr.mxu0 0.0
    %2352 = vmatpush1.msra.mxu0 0.0
    %2353 = vmatprep.subr.mxu0 0.0
    %2354 = vmatpush1.msra.mxu0 0.0
    %2355 = vmatprep.mubr.f32.mxu0 0.0
    %2356 = vmatmul.mubr.f32.gmra.mrb[0].mxu0 %v2286
    %v2357 = vpop.f32.mrb[0].mxu0
    %v2358 = vadd.f32 0.0, %v2357
    %v2359 = vpop.f32.mrb[0].mxu0
    %2360 = vmatprep.mubr.f32.mxu0 0.0
    %2361 = vmatmul.mubr.f32.gmra.mrb[0].mxu0 %v2289
    %v2362 = vpop.f32.mrb[0].mxu0
    %v2363 = vadd.f32 0.0, %v2362
    %v2364 = vpop.f32.mrb[0].mxu0
    %2365 = vdwg.mxu0
    %2366 = vst [vmem:[#allocation10] sm:$0xff] %v2358
    %2367 = vst [vmem:[#allocation10 + $0x8] sm:$0xff] %v2363
    // Predicated region
    $region78: #{tpu_custom_call.1} parent=1 // pred_check
      _
    $region79: #{tpu_custom_call.1} parent=1 // pred_check_branch
      %2369 = sbr.rel (0) target = $region81
    $region80: #{tpu_custom_call.1} parent=1 // pred_region
      %s2371 = ssub.s32 256, 256
      %2372 = vsyncadd [#allocation4], %s2371
      %s2373 = sshll.u32 [#allocation10], 4
      %s2374 = int_to_ptr.vmem [resolvable:$true] %s2373
      %2379 = dma.vmem_to_hbm [thread:$0]  %s2374, 256, %s15, [#allocation4], 128, 128, 8
    $region81: #{tpu_custom_call.1} parent=1 // pred_fallthru
      _
    // Predicated region
    $region82: #{tpu_custom_call.1} parent=1 // pred_check
      _
    $region83: #{tpu_custom_call.1} parent=1 // pred_check_branch
      %2381 = sbr.rel (0) target = $region85
    $region84: #{tpu_custom_call.1} parent=1 // pred_region
      %2382 = dma.done [#allocation4], 256
    $region85: #{tpu_custom_call.1} parent=1 // pred_fallthru
      _
    %2383 = vsyncpa [#allocation3], 1
    %2384 = vsyncpa [#allocation6], 1
    %2385 = vsyncpa [#allocation9], 1
    %2386 = vsyncpa [#allocation4], 1

</llo_original>
